<compile_context>
chip_gen: v7x
topology: tpu7x:2x2x1
jax: 0.10.0
libtpu: 0.0.40
codegen_flags: <defaults>
</compile_context>

<pallas_src>
import functools
import math

import jax
import jax.numpy as jnp
from jax import lax
from jax.experimental import pallas as pl
from jax.experimental.pallas import tpu as pltpu

LN_EPS = 1e-5  # PyTorch nn.LayerNorm default


def _layer_norm(x, gamma, beta):
    mu = jnp.mean(x, axis=-1, keepdims=True)
    d = x - mu
    var = jnp.mean(d * d, axis=-1, keepdims=True)
    return d * lax.rsqrt(var + LN_EPS) * gamma + beta   # rsqrt -> EUP slot


def _sigmoid(x):
    return 1.0 / (1.0 + jnp.exp(-x))


def _gru_cell(x, h, w_ih, w_hh, b_ih, b_hh, H):
    # PyTorch GRUCell, gates packed [r | z | n]; all gate slices are 128-lane aligned (H=128).
    gi = jnp.dot(x, w_ih, preferred_element_type=jnp.float32) + b_ih      # (B, 3H)
    gh = jnp.dot(h, w_hh, preferred_element_type=jnp.float32) + b_hh      # (B, 3H)
    r = _sigmoid(gi[:, 0:H] + gh[:, 0:H])
    z = _sigmoid(gi[:, H:2 * H] + gh[:, H:2 * H])
    n = jnp.tanh(gi[:, 2 * H:3 * H] + r * gh[:, 2 * H:3 * H])
    return (1.0 - z) * n + z * h


def _actor_critic_kernel(
    state_ref,
    w_fe1, b_fe1, g_ln1, be_ln1,
    w_fe2, b_fe2, g_ln2, be_ln2,
    w_ih0, w_hh0, b_ih0, b_hh0,
    w_ih1, w_hh1, b_ih1, b_hh1,
    h_in_ref,
    w_ac1, b_ac1, w_a2, b_a2, w_c2, b_c2,
    probs_ref, value_ref, h_out_ref,
    *, H,
):
    x = state_ref[...]                                                    # (B, state_dim)

    # ---- feature_extractor: Linear -> LayerNorm -> ReLU, twice ----
    h = jnp.dot(x, w_fe1[...], preferred_element_type=jnp.float32) + b_fe1[...]
    h = jnp.maximum(_layer_norm(h, g_ln1[...], be_ln1[...]), 0.0)
    h = jnp.dot(h, w_fe2[...], preferred_element_type=jnp.float32) + b_fe2[...]
    feat = jnp.maximum(_layer_norm(h, g_ln2[...], be_ln2[...]), 0.0)      # (B, H)

    # ---- GRU memory: 2 layers, single time step (seq_len = 1) ----
    h0 = h_in_ref[0]                                                      # (B, H)
    h1 = h_in_ref[1]
    h0n = _gru_cell(feat, h0, w_ih0[...], w_hh0[...], b_ih0[...], b_hh0[...], H)
    h1n = _gru_cell(h0n, h1, w_ih1[...], w_hh1[...], b_ih1[...], b_hh1[...], H)
    h_out_ref[0] = h0n
    h_out_ref[1] = h1n                                                    # GRU output = last layer

    # ---- actor & critic hidden layers: pre-fused (H, 2H) matmul, 128-lane aligned split ----
    ac = jnp.dot(h1n, w_ac1[...], preferred_element_type=jnp.float32) + b_ac1[...]   # (B, 2H)
    ac = jnp.maximum(ac, 0.0)
    a_h = ac[:, :H]
    c_h = ac[:, H:]

    # actor head + exact softmax (action_probs feed a Categorical downstream -> must sum to 1)
    logits = jnp.dot(a_h, w_a2[...], preferred_element_type=jnp.float32) + b_a2[...]  # (B, A)
    m = jnp.max(logits, axis=-1, keepdims=True)
    e = jnp.exp(logits - m)
    probs_ref[...] = e / jnp.sum(e, axis=-1, keepdims=True)

    # critic head
    value_ref[...] = jnp.dot(c_h, w_c2[...], preferred_element_type=jnp.float32) + b_c2[...]


def actor_critic_forward(state, hidden, params):
    """state: (B, state_dim), hidden: (2, B, H).  Returns (action_probs, state_value, new_hidden),
    matching ActorCriticNetwork.forward with use_attention=False, use_memory=True."""
    B = state.shape[0]
    H = params["hidden_dim"]
    A = params["action_dim"]

    kernel = functools.partial(_actor_critic_kernel, H=H)
    vmem = pl.BlockSpec(memory_space=pltpu.MemorySpace.VMEM)

    args = (
        state,
        params["w_fe1"], params["b_fe1"], params["g_ln1"], params["b_ln1"],
        params["w_fe2"], params["b_fe2"], params["g_ln2"], params["b_ln2"],
        params["w_ih0"], params["w_hh0"], params["b_ih0"], params["b_hh0"],
        params["w_ih1"], params["w_hh1"], params["b_ih1"], params["b_hh1"],
        hidden,
        params["w_ac1"], params["b_ac1"], params["w_a2"], params["b_a2"],
        params["w_c2"], params["b_c2"],
    )

    # Gridless single-step call: all params + activations (~1.1 MiB f32) live in VMEM, so there
    # is no pipeline prologue/epilogue and the whole forward costs one kernel launch.
    probs, value, h_out = pl.pallas_call(
        kernel,
        out_shape=(
            jax.ShapeDtypeStruct((B, A), jnp.float32),
            jax.ShapeDtypeStruct((B, 1), jnp.float32),
            jax.ShapeDtypeStruct((2, B, H), jnp.float32),
        ),
        in_specs=[vmem] * len(args),
        out_specs=(vmem, vmem, vmem),
    )(*args)
    return probs, value, h_out


def init_params(key, state_dim, action_dim, hidden_dim=128):
    """Parameter construction + ALL weight fusion done once at load time (not per forward)."""
    H = hidden_dim
    ks = list(jax.random.split(key, 12))
    it = iter(ks)

    def linear(k, fan_in, fan_out):
        kw, kb = jax.random.split(k)
        lim = 1.0 / math.sqrt(float(fan_in))
        w = jax.random.uniform(kw, (fan_in, fan_out), jnp.float32, -lim, lim)
        b = jax.random.uniform(kb, (1, fan_out), jnp.float32, -lim, lim)
        return w, b

    def gru_layer(k, in_dim):
        kiw, kib, khw, khb = jax.random.split(k, 4)
        lim = 1.0 / math.sqrt(float(H))
        w_ih = jax.random.uniform(kiw, (in_dim, 3 * H), jnp.float32, -lim, lim)
        w_hh = jax.random.uniform(khw, (H, 3 * H), jnp.float32, -lim, lim)
        b_ih = jax.random.uniform(kib, (1, 3 * H), jnp.float32, -lim, lim)
        b_hh = jax.random.uniform(khb, (1, 3 * H), jnp.float32, -lim, lim)
        return w_ih, w_hh, b_ih, b_hh

    w_fe1, b_fe1 = linear(next(it), state_dim, H)
    w_fe2, b_fe2 = linear(next(it), H, H)
    # LayerNorm affine params (PyTorch default gamma=1, beta=0); perturbed so the LN path is exercised.
    g_ln1 = 1.0 + 0.1 * jax.random.normal(next(it), (1, H), jnp.float32)
    b_ln1 = 0.1 * jax.random.normal(next(it), (1, H), jnp.float32)
    g_ln2 = 1.0 + 0.1 * jax.random.normal(next(it), (1, H), jnp.float32)
    b_ln2 = 0.1 * jax.random.normal(next(it), (1, H), jnp.float32)

    w_ih0, w_hh0, b_ih0, b_hh0 = gru_layer(next(it), H)
    w_ih1, w_hh1, b_ih1, b_hh1 = gru_layer(next(it), H)

    w_a1, b_a1 = linear(next(it), H, H)
    w_a2, b_a2 = linear(next(it), H, action_dim)
    w_c1, b_c1 = linear(next(it), H, H)
    w_c2, b_c2 = linear(next(it), H, 1)

    # Load-time pre-fusion: actor & critic first layers share the same input -> one (H, 2H)
    # matmul; the split in the kernel lands exactly on the 128-lane boundary (free view).
    w_ac1 = jnp.concatenate([w_a1, w_c1], axis=1)
    b_ac1 = jnp.concatenate([b_a1, b_c1], axis=1)

    return dict(
        hidden_dim=H, action_dim=action_dim,
        w_fe1=w_fe1, b_fe1=b_fe1, g_ln1=g_ln1, b_ln1=b_ln1,
        w_fe2=w_fe2, b_fe2=b_fe2, g_ln2=g_ln2, b_ln2=b_ln2,
        w_ih0=w_ih0, w_hh0=w_hh0, b_ih0=b_ih0, b_hh0=b_hh0,
        w_ih1=w_ih1, w_hh1=w_hh1, b_ih1=b_ih1, b_hh1=b_hh1,
        w_ac1=w_ac1, b_ac1=b_ac1, w_a2=w_a2, b_a2=b_a2, w_c2=w_c2, b_c2=b_c2,
    )


def _reference(state, hidden, p):
    """Pure-JAX reference mirroring the PyTorch forward (use_attention=False, hidden provided)."""
    H = p["hidden_dim"]

    def ln(x, g, b):
        mu = jnp.mean(x, -1, keepdims=True)
        var = jnp.mean((x - mu) ** 2, -1, keepdims=True)
        return (x - mu) / jnp.sqrt(var + LN_EPS) * g + b

    h = jnp.maximum(ln(state @ p["w_fe1"] + p["b_fe1"], p["g_ln1"], p["b_ln1"]), 0.0)
    feat = jnp.maximum(ln(h @ p["w_fe2"] + p["b_fe2"], p["g_ln2"], p["b_ln2"]), 0.0)

    def gru_cell(x, h, w_ih, w_hh, b_ih, b_hh):
        gi = x @ w_ih + b_ih
        gh = h @ w_hh + b_hh
        r = jax.nn.sigmoid(gi[:, :H] + gh[:, :H])
        z = jax.nn.sigmoid(gi[:, H:2 * H] + gh[:, H:2 * H])
        n = jnp.tanh(gi[:, 2 * H:] + r * gh[:, 2 * H:])
        return (1.0 - z) * n + z * h

    h0 = gru_cell(feat, hidden[0], p["w_ih0"], p["w_hh0"], p["b_ih0"], p["b_hh0"])
    h1 = gru_cell(h0, hidden[1], p["w_ih1"], p["w_hh1"], p["b_ih1"], p["b_hh1"])
    new_hidden = jnp.stack([h0, h1])

    a_h = jnp.maximum(h1 @ p["w_ac1"][:, :H] + p["b_ac1"][:, :H], 0.0)
    c_h = jnp.maximum(h1 @ p["w_ac1"][:, H:] + p["b_ac1"][:, H:], 0.0)
    probs = jax.nn.softmax(a_h @ p["w_a2"] + p["b_a2"], axis=-1)
    value = c_h @ p["w_c2"] + p["b_c2"]
    return probs, value, new_hidden


if __name__ == "__main__":
    B, STATE_DIM, ACTION_DIM, HIDDEN = 8, 16, 8, 128

    key = jax.random.PRNGKey(0)
    k_state, k_params, k_hidden = jax.random.split(key, 3)
    state = jax.random.normal(k_state, (B, STATE_DIM), jnp.float32)
    params = init_params(k_params, STATE_DIM, ACTION_DIM, HIDDEN)
    # GRUMemory.init_hidden() would be zeros; use a nonzero hidden so the full recurrence is tested.
    hidden = 0.1 * jax.random.normal(k_hidden, (2, B, HIDDEN), jnp.float32)

    probs, value, new_hidden = actor_critic_forward(state, hidden, params)
    probs = jax.block_until_ready(probs)
    value = jax.block_until_ready(value)
    new_hidden = jax.block_until_ready(new_hidden)

    ref_p, ref_v, ref_h = _reference(state, hidden, params)

    assert probs.shape == (B, ACTION_DIM)
    assert value.shape == (B, 1)
    assert new_hidden.shape == (2, B, HIDDEN)
    assert jnp.allclose(jnp.sum(probs, axis=-1), 1.0, atol=1e-5), "action_probs must sum to 1"
    assert jnp.allclose(probs, ref_p, atol=5e-3, rtol=5e-3), float(jnp.max(jnp.abs(probs - ref_p)))
    assert jnp.allclose(value, ref_v, atol=5e-3, rtol=5e-3), float(jnp.max(jnp.abs(value - ref_v)))
    assert jnp.allclose(new_hidden, ref_h, atol=5e-3, rtol=5e-3), \
        float(jnp.max(jnp.abs(new_hidden - ref_h)))

    print("KERNEL_OK")
</pallas_src>

<mosaic_0001>
module attributes {stable_mosaic.version = 11 : i64} {
  func.func @_actor_critic_kernel(%arg0: memref<8x16xf32, #tpu.memory_space<vmem>>, %arg1: memref<16x128xf32, #tpu.memory_space<vmem>>, %arg2: memref<1x128xf32, #tpu.memory_space<vmem>>, %arg3: memref<1x128xf32, #tpu.memory_space<vmem>>, %arg4: memref<1x128xf32, #tpu.memory_space<vmem>>, %arg5: memref<128x128xf32, #tpu.memory_space<vmem>>, %arg6: memref<1x128xf32, #tpu.memory_space<vmem>>, %arg7: memref<1x128xf32, #tpu.memory_space<vmem>>, %arg8: memref<1x128xf32, #tpu.memory_space<vmem>>, %arg9: memref<128x384xf32, #tpu.memory_space<vmem>>, %arg10: memref<128x384xf32, #tpu.memory_space<vmem>>, %arg11: memref<1x384xf32, #tpu.memory_space<vmem>>, %arg12: memref<1x384xf32, #tpu.memory_space<vmem>>, %arg13: memref<128x384xf32, #tpu.memory_space<vmem>>, %arg14: memref<128x384xf32, #tpu.memory_space<vmem>>, %arg15: memref<1x384xf32, #tpu.memory_space<vmem>>, %arg16: memref<1x384xf32, #tpu.memory_space<vmem>>, %arg17: memref<2x8x128xf32, #tpu.memory_space<vmem>>, %arg18: memref<128x256xf32, #tpu.memory_space<vmem>>, %arg19: memref<1x256xf32, #tpu.memory_space<vmem>>, %arg20: memref<128x8xf32, #tpu.memory_space<vmem>>, %arg21: memref<1x8xf32, #tpu.memory_space<vmem>>, %arg22: memref<128x1xf32, #tpu.memory_space<vmem>>, %arg23: memref<1x1xf32, #tpu.memory_space<vmem>>, %arg24: memref<8x8xf32, #tpu.memory_space<vmem>>, %arg25: memref<8x1xf32, #tpu.memory_space<vmem>>, %arg26: memref<2x8x128xf32, #tpu.memory_space<vmem>>) attributes {dimension_semantics = [], scalar_prefetch = 0 : i64, scratch_operands = 0 : i64, tpu.core_type = #tpu.core_type<tc>} {
    %c0 = arith.constant 0 : index
    %c0_0 = arith.constant 0 : index
    %0 = vector.load %arg0[%c0, %c0_0] : memref<8x16xf32, #tpu.memory_space<vmem>>, vector<8x16xf32>
    %c0_1 = arith.constant 0 : index
    %c0_2 = arith.constant 0 : index
    %1 = vector.load %arg1[%c0_1, %c0_2] : memref<16x128xf32, #tpu.memory_space<vmem>>, vector<16x128xf32>
    %cst = arith.constant dense<0.000000e+00> : vector<8x128xf32>
    %2 = tpu.matmul %0, %1, %cst {dimension_numbers = #tpu.dot_dimension_numbers<[1], [0], [0], [1], [0, 0, 1, 1], [], []>} : vector<8x16xf32>, vector<16x128xf32>, vector<8x128xf32> -> vector<8x128xf32>
    %c0_3 = arith.constant 0 : index
    %c0_4 = arith.constant 0 : index
    %3 = vector.load %arg2[%c0_3, %c0_4] : memref<1x128xf32, #tpu.memory_space<vmem>>, vector<1x128xf32>
    %4 = vector.broadcast %3 : vector<1x128xf32> to vector<8x128xf32>
    %5 = arith.addf %2, %4 : vector<8x128xf32>
    %c0_5 = arith.constant 0 : index
    %c0_6 = arith.constant 0 : index
    %6 = vector.load %arg3[%c0_5, %c0_6] : memref<1x128xf32, #tpu.memory_space<vmem>>, vector<1x128xf32>
    %c0_7 = arith.constant 0 : index
    %c0_8 = arith.constant 0 : index
    %7 = vector.load %arg4[%c0_7, %c0_8] : memref<1x128xf32, #tpu.memory_space<vmem>>, vector<1x128xf32>
    %cst_9 = arith.constant dense<0.000000e+00> : vector<8xf32>
    %8 = vector.multi_reduction <add>, %5, %cst_9 [1] : vector<8x128xf32> to vector<8xf32>
    %9 = vector.shape_cast %8 : vector<8xf32> to vector<8x1xf32>
    %cst_10 = arith.constant 1.280000e+02 : f32
    %10 = vector.broadcast %cst_10 : f32 to vector<8x1xf32>
    %11 = arith.divf %9, %10 : vector<8x1xf32>
    %12 = vector.broadcast %11 : vector<8x1xf32> to vector<8x128xf32>
    %13 = arith.subf %5, %12 : vector<8x128xf32>
    %14 = arith.mulf %13, %13 : vector<8x128xf32>
    %cst_11 = arith.constant dense<0.000000e+00> : vector<8xf32>
    %15 = vector.multi_reduction <add>, %14, %cst_11 [1] : vector<8x128xf32> to vector<8xf32>
    %16 = vector.shape_cast %15 : vector<8xf32> to vector<8x1xf32>
    %cst_12 = arith.constant 1.280000e+02 : f32
    %17 = vector.broadcast %cst_12 : f32 to vector<8x1xf32>
    %18 = arith.divf %16, %17 : vector<8x1xf32>
    %cst_13 = arith.constant 9.99999974E-6 : f32
    %19 = vector.broadcast %cst_13 : f32 to vector<8x1xf32>
    %20 = arith.addf %18, %19 : vector<8x1xf32>
    %21 = math.rsqrt %20 : vector<8x1xf32>
    %22 = vector.broadcast %21 : vector<8x1xf32> to vector<8x128xf32>
    %23 = arith.mulf %13, %22 : vector<8x128xf32>
    %24 = vector.broadcast %6 : vector<1x128xf32> to vector<8x128xf32>
    %25 = arith.mulf %23, %24 : vector<8x128xf32>
    %26 = vector.broadcast %7 : vector<1x128xf32> to vector<8x128xf32>
    %27 = arith.addf %25, %26 : vector<8x128xf32>
    %cst_14 = arith.constant 0.000000e+00 : f32
    %28 = vector.broadcast %cst_14 : f32 to vector<8x128xf32>
    %29 = arith.maximumf %27, %28 : vector<8x128xf32>
    %c0_15 = arith.constant 0 : index
    %c0_16 = arith.constant 0 : index
    %30 = vector.load %arg5[%c0_15, %c0_16] : memref<128x128xf32, #tpu.memory_space<vmem>>, vector<128x128xf32>
    %cst_17 = arith.constant dense<0.000000e+00> : vector<8x128xf32>
    %31 = tpu.matmul %29, %30, %cst_17 {dimension_numbers = #tpu.dot_dimension_numbers<[1], [0], [0], [1], [0, 0, 1, 1], [], []>} : vector<8x128xf32>, vector<128x128xf32>, vector<8x128xf32> -> vector<8x128xf32>
    %c0_18 = arith.constant 0 : index
    %c0_19 = arith.constant 0 : index
    %32 = vector.load %arg6[%c0_18, %c0_19] : memref<1x128xf32, #tpu.memory_space<vmem>>, vector<1x128xf32>
    %33 = vector.broadcast %32 : vector<1x128xf32> to vector<8x128xf32>
    %34 = arith.addf %31, %33 : vector<8x128xf32>
    %c0_20 = arith.constant 0 : index
    %c0_21 = arith.constant 0 : index
    %35 = vector.load %arg7[%c0_20, %c0_21] : memref<1x128xf32, #tpu.memory_space<vmem>>, vector<1x128xf32>
    %c0_22 = arith.constant 0 : index
    %c0_23 = arith.constant 0 : index
    %36 = vector.load %arg8[%c0_22, %c0_23] : memref<1x128xf32, #tpu.memory_space<vmem>>, vector<1x128xf32>
    %cst_24 = arith.constant dense<0.000000e+00> : vector<8xf32>
    %37 = vector.multi_reduction <add>, %34, %cst_24 [1] : vector<8x128xf32> to vector<8xf32>
    %38 = vector.shape_cast %37 : vector<8xf32> to vector<8x1xf32>
    %cst_25 = arith.constant 1.280000e+02 : f32
    %39 = vector.broadcast %cst_25 : f32 to vector<8x1xf32>
    %40 = arith.divf %38, %39 : vector<8x1xf32>
    %41 = vector.broadcast %40 : vector<8x1xf32> to vector<8x128xf32>
    %42 = arith.subf %34, %41 : vector<8x128xf32>
    %43 = arith.mulf %42, %42 : vector<8x128xf32>
    %cst_26 = arith.constant dense<0.000000e+00> : vector<8xf32>
    %44 = vector.multi_reduction <add>, %43, %cst_26 [1] : vector<8x128xf32> to vector<8xf32>
    %45 = vector.shape_cast %44 : vector<8xf32> to vector<8x1xf32>
    %cst_27 = arith.constant 1.280000e+02 : f32
    %46 = vector.broadcast %cst_27 : f32 to vector<8x1xf32>
    %47 = arith.divf %45, %46 : vector<8x1xf32>
    %cst_28 = arith.constant 9.99999974E-6 : f32
    %48 = vector.broadcast %cst_28 : f32 to vector<8x1xf32>
    %49 = arith.addf %47, %48 : vector<8x1xf32>
    %50 = math.rsqrt %49 : vector<8x1xf32>
    %51 = vector.broadcast %50 : vector<8x1xf32> to vector<8x128xf32>
    %52 = arith.mulf %42, %51 : vector<8x128xf32>
    %53 = vector.broadcast %35 : vector<1x128xf32> to vector<8x128xf32>
    %54 = arith.mulf %52, %53 : vector<8x128xf32>
    %55 = vector.broadcast %36 : vector<1x128xf32> to vector<8x128xf32>
    %56 = arith.addf %54, %55 : vector<8x128xf32>
    %cst_29 = arith.constant 0.000000e+00 : f32
    %57 = vector.broadcast %cst_29 : f32 to vector<8x128xf32>
    %58 = arith.maximumf %56, %57 : vector<8x128xf32>
    %c0_30 = arith.constant 0 : index
    %c0_31 = arith.constant 0 : index
    %c0_32 = arith.constant 0 : index
    %59 = vector.load %arg17[%c0_30, %c0_31, %c0_32] : memref<2x8x128xf32, #tpu.memory_space<vmem>>, vector<1x8x128xf32>
    %60 = vector.shape_cast %59 : vector<1x8x128xf32> to vector<8x128xf32>
    %c1 = arith.constant 1 : index
    %c0_33 = arith.constant 0 : index
    %c0_34 = arith.constant 0 : index
    %61 = vector.load %arg17[%c1, %c0_33, %c0_34] : memref<2x8x128xf32, #tpu.memory_space<vmem>>, vector<1x8x128xf32>
    %62 = vector.shape_cast %61 : vector<1x8x128xf32> to vector<8x128xf32>
    %c0_35 = arith.constant 0 : index
    %c0_36 = arith.constant 0 : index
    %63 = vector.load %arg9[%c0_35, %c0_36] : memref<128x384xf32, #tpu.memory_space<vmem>>, vector<128x384xf32>
    %c0_37 = arith.constant 0 : index
    %c0_38 = arith.constant 0 : index
    %64 = vector.load %arg10[%c0_37, %c0_38] : memref<128x384xf32, #tpu.memory_space<vmem>>, vector<128x384xf32>
    %c0_39 = arith.constant 0 : index
    %c0_40 = arith.constant 0 : index
    %65 = vector.load %arg11[%c0_39, %c0_40] : memref<1x384xf32, #tpu.memory_space<vmem>>, vector<1x384xf32>
    %c0_41 = arith.constant 0 : index
    %c0_42 = arith.constant 0 : index
    %66 = vector.load %arg12[%c0_41, %c0_42] : memref<1x384xf32, #tpu.memory_space<vmem>>, vector<1x384xf32>
    %cst_43 = arith.constant dense<0.000000e+00> : vector<8x384xf32>
    %67 = tpu.matmul %58, %63, %cst_43 {dimension_numbers = #tpu.dot_dimension_numbers<[1], [0], [0], [1], [0, 0, 1, 1], [], []>} : vector<8x128xf32>, vector<128x384xf32>, vector<8x384xf32> -> vector<8x384xf32>
    %68 = vector.broadcast %65 : vector<1x384xf32> to vector<8x384xf32>
    %69 = arith.addf %67, %68 : vector<8x384xf32>
    %cst_44 = arith.constant dense<0.000000e+00> : vector<8x384xf32>
    %70 = tpu.matmul %60, %64, %cst_44 {dimension_numbers = #tpu.dot_dimension_numbers<[1], [0], [0], [1], [0, 0, 1, 1], [], []>} : vector<8x128xf32>, vector<128x384xf32>, vector<8x384xf32> -> vector<8x384xf32>
    %71 = vector.broadcast %66 : vector<1x384xf32> to vector<8x384xf32>
    %72 = arith.addf %70, %71 : vector<8x384xf32>
    %73 = vector.extract_strided_slice %69 {offsets = [0, 0], sizes = [8, 128], strides = [1, 1]} : vector<8x384xf32> to vector<8x128xf32>
    %74 = vector.extract_strided_slice %72 {offsets = [0, 0], sizes = [8, 128], strides = [1, 1]} : vector<8x384xf32> to vector<8x128xf32>
    %75 = arith.addf %73, %74 : vector<8x128xf32>
    %cst_45 = arith.constant 0.000000e+00 : f32
    %76 = vector.broadcast %cst_45 : f32 to vector<8x128xf32>
    %77 = arith.subf %76, %75 : vector<8x128xf32>
    %78 = math.exp %77 : vector<8x128xf32>
    %cst_46 = arith.constant 1.000000e+00 : f32
    %79 = vector.broadcast %cst_46 : f32 to vector<8x128xf32>
    %80 = arith.addf %79, %78 : vector<8x128xf32>
    %cst_47 = arith.constant 1.000000e+00 : f32
    %81 = vector.broadcast %cst_47 : f32 to vector<8x128xf32>
    %82 = arith.divf %81, %80 : vector<8x128xf32>
    %83 = vector.extract_strided_slice %69 {offsets = [0, 128], sizes = [8, 128], strides = [1, 1]} : vector<8x384xf32> to vector<8x128xf32>
    %84 = vector.extract_strided_slice %72 {offsets = [0, 128], sizes = [8, 128], strides = [1, 1]} : vector<8x384xf32> to vector<8x128xf32>
    %85 = arith.addf %83, %84 : vector<8x128xf32>
    %cst_48 = arith.constant 0.000000e+00 : f32
    %86 = vector.broadcast %cst_48 : f32 to vector<8x128xf32>
    %87 = arith.subf %86, %85 : vector<8x128xf32>
    %88 = math.exp %87 : vector<8x128xf32>
    %cst_49 = arith.constant 1.000000e+00 : f32
    %89 = vector.broadcast %cst_49 : f32 to vector<8x128xf32>
    %90 = arith.addf %89, %88 : vector<8x128xf32>
    %cst_50 = arith.constant 1.000000e+00 : f32
    %91 = vector.broadcast %cst_50 : f32 to vector<8x128xf32>
    %92 = arith.divf %91, %90 : vector<8x128xf32>
    %93 = vector.extract_strided_slice %69 {offsets = [0, 256], sizes = [8, 128], strides = [1, 1]} : vector<8x384xf32> to vector<8x128xf32>
    %94 = vector.extract_strided_slice %72 {offsets = [0, 256], sizes = [8, 128], strides = [1, 1]} : vector<8x384xf32> to vector<8x128xf32>
    %95 = arith.mulf %82, %94 : vector<8x128xf32>
    %96 = arith.addf %93, %95 : vector<8x128xf32>
    %97 = math.tanh %96 : vector<8x128xf32>
    %cst_51 = arith.constant 1.000000e+00 : f32
    %98 = vector.broadcast %cst_51 : f32 to vector<8x128xf32>
    %99 = arith.subf %98, %92 : vector<8x128xf32>
    %100 = arith.mulf %99, %97 : vector<8x128xf32>
    %101 = arith.mulf %92, %60 : vector<8x128xf32>
    %102 = arith.addf %100, %101 : vector<8x128xf32>
    %c0_52 = arith.constant 0 : index
    %c0_53 = arith.constant 0 : index
    %103 = vector.load %arg13[%c0_52, %c0_53] : memref<128x384xf32, #tpu.memory_space<vmem>>, vector<128x384xf32>
    %c0_54 = arith.constant 0 : index
    %c0_55 = arith.constant 0 : index
    %104 = vector.load %arg14[%c0_54, %c0_55] : memref<128x384xf32, #tpu.memory_space<vmem>>, vector<128x384xf32>
    %c0_56 = arith.constant 0 : index
    %c0_57 = arith.constant 0 : index
    %105 = vector.load %arg15[%c0_56, %c0_57] : memref<1x384xf32, #tpu.memory_space<vmem>>, vector<1x384xf32>
    %c0_58 = arith.constant 0 : index
    %c0_59 = arith.constant 0 : index
    %106 = vector.load %arg16[%c0_58, %c0_59] : memref<1x384xf32, #tpu.memory_space<vmem>>, vector<1x384xf32>
    %cst_60 = arith.constant dense<0.000000e+00> : vector<8x384xf32>
    %107 = tpu.matmul %102, %103, %cst_60 {dimension_numbers = #tpu.dot_dimension_numbers<[1], [0], [0], [1], [0, 0, 1, 1], [], []>} : vector<8x128xf32>, vector<128x384xf32>, vector<8x384xf32> -> vector<8x384xf32>
    %108 = vector.broadcast %105 : vector<1x384xf32> to vector<8x384xf32>
    %109 = arith.addf %107, %108 : vector<8x384xf32>
    %cst_61 = arith.constant dense<0.000000e+00> : vector<8x384xf32>
    %110 = tpu.matmul %62, %104, %cst_61 {dimension_numbers = #tpu.dot_dimension_numbers<[1], [0], [0], [1], [0, 0, 1, 1], [], []>} : vector<8x128xf32>, vector<128x384xf32>, vector<8x384xf32> -> vector<8x384xf32>
    %111 = vector.broadcast %106 : vector<1x384xf32> to vector<8x384xf32>
    %112 = arith.addf %110, %111 : vector<8x384xf32>
    %113 = vector.extract_strided_slice %109 {offsets = [0, 0], sizes = [8, 128], strides = [1, 1]} : vector<8x384xf32> to vector<8x128xf32>
    %114 = vector.extract_strided_slice %112 {offsets = [0, 0], sizes = [8, 128], strides = [1, 1]} : vector<8x384xf32> to vector<8x128xf32>
    %115 = arith.addf %113, %114 : vector<8x128xf32>
    %cst_62 = arith.constant 0.000000e+00 : f32
    %116 = vector.broadcast %cst_62 : f32 to vector<8x128xf32>
    %117 = arith.subf %116, %115 : vector<8x128xf32>
    %118 = math.exp %117 : vector<8x128xf32>
    %cst_63 = arith.constant 1.000000e+00 : f32
    %119 = vector.broadcast %cst_63 : f32 to vector<8x128xf32>
    %120 = arith.addf %119, %118 : vector<8x128xf32>
    %cst_64 = arith.constant 1.000000e+00 : f32
    %121 = vector.broadcast %cst_64 : f32 to vector<8x128xf32>
    %122 = arith.divf %121, %120 : vector<8x128xf32>
    %123 = vector.extract_strided_slice %109 {offsets = [0, 128], sizes = [8, 128], strides = [1, 1]} : vector<8x384xf32> to vector<8x128xf32>
    %124 = vector.extract_strided_slice %112 {offsets = [0, 128], sizes = [8, 128], strides = [1, 1]} : vector<8x384xf32> to vector<8x128xf32>
    %125 = arith.addf %123, %124 : vector<8x128xf32>
    %cst_65 = arith.constant 0.000000e+00 : f32
    %126 = vector.broadcast %cst_65 : f32 to vector<8x128xf32>
    %127 = arith.subf %126, %125 : vector<8x128xf32>
    %128 = math.exp %127 : vector<8x128xf32>
    %cst_66 = arith.constant 1.000000e+00 : f32
    %129 = vector.broadcast %cst_66 : f32 to vector<8x128xf32>
    %130 = arith.addf %129, %128 : vector<8x128xf32>
    %cst_67 = arith.constant 1.000000e+00 : f32
    %131 = vector.broadcast %cst_67 : f32 to vector<8x128xf32>
    %132 = arith.divf %131, %130 : vector<8x128xf32>
    %133 = vector.extract_strided_slice %109 {offsets = [0, 256], sizes = [8, 128], strides = [1, 1]} : vector<8x384xf32> to vector<8x128xf32>
    %134 = vector.extract_strided_slice %112 {offsets = [0, 256], sizes = [8, 128], strides = [1, 1]} : vector<8x384xf32> to vector<8x128xf32>
    %135 = arith.mulf %122, %134 : vector<8x128xf32>
    %136 = arith.addf %133, %135 : vector<8x128xf32>
    %137 = math.tanh %136 : vector<8x128xf32>
    %cst_68 = arith.constant 1.000000e+00 : f32
    %138 = vector.broadcast %cst_68 : f32 to vector<8x128xf32>
    %139 = arith.subf %138, %132 : vector<8x128xf32>
    %140 = arith.mulf %139, %137 : vector<8x128xf32>
    %141 = arith.mulf %132, %62 : vector<8x128xf32>
    %142 = arith.addf %140, %141 : vector<8x128xf32>
    %c0_69 = arith.constant 0 : index
    %c0_70 = arith.constant 0 : index
    %c0_71 = arith.constant 0 : index
    %143 = vector.load %arg26[%c0_69, %c0_70, %c0_71] : memref<2x8x128xf32, #tpu.memory_space<vmem>>, vector<1x8x128xf32>
    %144 = vector.shape_cast %143 : vector<1x8x128xf32> to vector<8x128xf32>
    %145 = vector.shape_cast %102 : vector<8x128xf32> to vector<1x8x128xf32>
    tpu.vector_store %arg26[%c0_69, %c0_70, %c0_71], %145 {strides = array<i32>} : memref<2x8x128xf32, #tpu.memory_space<vmem>>, vector<1x8x128xf32>,
    %c1_72 = arith.constant 1 : index
    %c0_73 = arith.constant 0 : index
    %c0_74 = arith.constant 0 : index
    %146 = vector.load %arg26[%c1_72, %c0_73, %c0_74] : memref<2x8x128xf32, #tpu.memory_space<vmem>>, vector<1x8x128xf32>
    %147 = vector.shape_cast %146 : vector<1x8x128xf32> to vector<8x128xf32>
    %148 = vector.shape_cast %142 : vector<8x128xf32> to vector<1x8x128xf32>
    tpu.vector_store %arg26[%c1_72, %c0_73, %c0_74], %148 {strides = array<i32>} : memref<2x8x128xf32, #tpu.memory_space<vmem>>, vector<1x8x128xf32>,
    %c0_75 = arith.constant 0 : index
    %c0_76 = arith.constant 0 : index
    %149 = vector.load %arg18[%c0_75, %c0_76] : memref<128x256xf32, #tpu.memory_space<vmem>>, vector<128x256xf32>
    %cst_77 = arith.constant dense<0.000000e+00> : vector<8x256xf32>
    %150 = tpu.matmul %142, %149, %cst_77 {dimension_numbers = #tpu.dot_dimension_numbers<[1], [0], [0], [1], [0, 0, 1, 1], [], []>} : vector<8x128xf32>, vector<128x256xf32>, vector<8x256xf32> -> vector<8x256xf32>
    %c0_78 = arith.constant 0 : index
    %c0_79 = arith.constant 0 : index
    %151 = vector.load %arg19[%c0_78, %c0_79] : memref<1x256xf32, #tpu.memory_space<vmem>>, vector<1x256xf32>
    %152 = vector.broadcast %151 : vector<1x256xf32> to vector<8x256xf32>
    %153 = arith.addf %150, %152 : vector<8x256xf32>
    %cst_80 = arith.constant 0.000000e+00 : f32
    %154 = vector.broadcast %cst_80 : f32 to vector<8x256xf32>
    %155 = arith.maximumf %153, %154 : vector<8x256xf32>
    %156 = vector.extract_strided_slice %155 {offsets = [0, 0], sizes = [8, 128], strides = [1, 1]} : vector<8x256xf32> to vector<8x128xf32>
    %157 = vector.extract_strided_slice %155 {offsets = [0, 128], sizes = [8, 128], strides = [1, 1]} : vector<8x256xf32> to vector<8x128xf32>
    %c0_81 = arith.constant 0 : index
    %c0_82 = arith.constant 0 : index
    %158 = vector.load %arg20[%c0_81, %c0_82] : memref<128x8xf32, #tpu.memory_space<vmem>>, vector<128x8xf32>
    %cst_83 = arith.constant dense<0.000000e+00> : vector<8x8xf32>
    %159 = tpu.matmul %156, %158, %cst_83 {dimension_numbers = #tpu.dot_dimension_numbers<[1], [0], [0], [1], [0, 0, 1, 1], [], []>} : vector<8x128xf32>, vector<128x8xf32>, vector<8x8xf32> -> vector<8x8xf32>
    %c0_84 = arith.constant 0 : index
    %c0_85 = arith.constant 0 : index
    %160 = vector.load %arg21[%c0_84, %c0_85] : memref<1x8xf32, #tpu.memory_space<vmem>>, vector<1x8xf32>
    %161 = vector.broadcast %160 : vector<1x8xf32> to vector<8x8xf32>
    %162 = arith.addf %159, %161 : vector<8x8xf32>
    %cst_86 = arith.constant dense<0xFF800000> : vector<8xf32>
    %163 = vector.multi_reduction <maximumf>, %162, %cst_86 [1] : vector<8x8xf32> to vector<8xf32>
    %164 = vector.shape_cast %163 : vector<8xf32> to vector<8x1xf32>
    %165 = vector.broadcast %164 : vector<8x1xf32> to vector<8x8xf32>
    %166 = arith.subf %162, %165 : vector<8x8xf32>
    %167 = math.exp %166 : vector<8x8xf32>
    %cst_87 = arith.constant dense<0.000000e+00> : vector<8xf32>
    %168 = vector.multi_reduction <add>, %167, %cst_87 [1] : vector<8x8xf32> to vector<8xf32>
    %169 = vector.shape_cast %168 : vector<8xf32> to vector<8x1xf32>
    %170 = vector.broadcast %169 : vector<8x1xf32> to vector<8x8xf32>
    %171 = arith.divf %167, %170 : vector<8x8xf32>
    %c0_88 = arith.constant 0 : index
    %c0_89 = arith.constant 0 : index
    %172 = vector.load %arg24[%c0_88, %c0_89] : memref<8x8xf32, #tpu.memory_space<vmem>>, vector<8x8xf32>
    tpu.vector_store %arg24[%c0_88, %c0_89], %171 {strides = array<i32>} : memref<8x8xf32, #tpu.memory_space<vmem>>, vector<8x8xf32>,
    %c0_90 = arith.constant 0 : index
    %c0_91 = arith.constant 0 : index
    %173 = vector.load %arg22[%c0_90, %c0_91] : memref<128x1xf32, #tpu.memory_space<vmem>>, vector<128x1xf32>
    %cst_92 = arith.constant dense<0.000000e+00> : vector<8x1xf32>
    %174 = tpu.matmul %157, %173, %cst_92 {dimension_numbers = #tpu.dot_dimension_numbers<[1], [0], [0], [1], [0, 0, 1, 1], [], []>} : vector<8x128xf32>, vector<128x1xf32>, vector<8x1xf32> -> vector<8x1xf32>
    %c0_93 = arith.constant 0 : index
    %c0_94 = arith.constant 0 : index
    %175 = vector.load %arg23[%c0_93, %c0_94] : memref<1x1xf32, #tpu.memory_space<vmem>>, vector<1x1xf32>
    %176 = vector.broadcast %175 : vector<1x1xf32> to vector<8x1xf32>
    %177 = arith.addf %174, %176 : vector<8x1xf32>
    %c0_95 = arith.constant 0 : index
    %c0_96 = arith.constant 0 : index
    %178 = vector.load %arg25[%c0_95, %c0_96] : memref<8x1xf32, #tpu.memory_space<vmem>>, vector<8x1xf32>
    tpu.vector_store %arg25[%c0_95, %c0_96], %177 {strides = array<i32>} : memref<8x1xf32, #tpu.memory_space<vmem>>, vector<8x1xf32>,
    return
  }
}

</mosaic_0001>

<llo_original>
// kernel: tpu_custom_call.1
$region0: #{tpu_custom_call.1}
  #allocation0 [shape = 'u32[]', space=smem, size = 0x4, offset = 0x4, fixed_abs, tag = 'smem constant byte address 0x4 - core index']
  #allocation1 [shape = 'u32[144,128]{1,0:T(1,128)}', space=vmem, size = 0x12000, scoped, tag = 'internal scratch']
  #allocation2 [shape = 'f32[1,1]{1,0:T(1,128)S(1)}', space=vmem, size = 0x200, scoped, tag = 'scoped memory for tpu_custom_call.1']
  %s0 = inlined_call_operand.vmem [shape: f32[8,16], index: 0, kind: input, shape index: {}]
  %s1 = inlined_call_operand.vmem [shape: f32[16,128], index: 1, kind: input, shape index: {}]
  %s2 = inlined_call_operand.vmem [shape: f32[1,128], index: 2, kind: input, shape index: {}]
  %s3 = inlined_call_operand.vmem [shape: f32[1,128], index: 3, kind: input, shape index: {}]
  %s4 = inlined_call_operand.vmem [shape: f32[1,128], index: 4, kind: input, shape index: {}]
  %s5 = inlined_call_operand.hbm [shape: f32[128,128], index: 5, kind: input, shape index: {}]
  %s6 = inlined_call_operand.vmem [shape: f32[1,128], index: 6, kind: input, shape index: {}]
  %s7 = inlined_call_operand.vmem [shape: f32[1,128], index: 7, kind: input, shape index: {}]
  %s8 = inlined_call_operand.vmem [shape: f32[1,128], index: 8, kind: input, shape index: {}]
  %s9 = inlined_call_operand.hbm [shape: f32[128,384], index: 9, kind: input, shape index: {}]
  %s10 = inlined_call_operand.hbm [shape: f32[128,384], index: 10, kind: input, shape index: {}]
  %s11 = inlined_call_operand.vmem [shape: f32[1,384], index: 11, kind: input, shape index: {}]
  %s12 = inlined_call_operand.vmem [shape: f32[1,384], index: 12, kind: input, shape index: {}]
  %s13 = inlined_call_operand.hbm [shape: f32[128,384], index: 13, kind: input, shape index: {}]
  %s14 = inlined_call_operand.hbm [shape: f32[128,384], index: 14, kind: input, shape index: {}]
  %s15 = inlined_call_operand.vmem [shape: f32[1,384], index: 15, kind: input, shape index: {}]
  %s16 = inlined_call_operand.vmem [shape: f32[1,384], index: 16, kind: input, shape index: {}]
  %s17 = inlined_call_operand.vmem [shape: f32[2,8,128], index: 17, kind: input, shape index: {}]
  %s18 = inlined_call_operand.vmem [shape: f32[128,256], index: 18, kind: input, shape index: {}]
  %s19 = inlined_call_operand.vmem [shape: f32[1,256], index: 19, kind: input, shape index: {}]
  %s20 = inlined_call_operand.vmem [shape: f32[128,8], index: 20, kind: input, shape index: {}]
  %s21 = inlined_call_operand.vmem [shape: f32[1,8], index: 21, kind: input, shape index: {}]
  %s22 = inlined_call_operand.vmem [shape: f32[128,1], index: 22, kind: input, shape index: {}]
  %s23 = inlined_call_operand.<no memory space> [shape: f32[1,1], index: 23, kind: input, shape index: {}]
  %s24 = inlined_call_operand.hbm [shape: f32[8,8], index: 24, kind: output, shape index: {0}]
  %s25 = inlined_call_operand.vmem [shape: f32[8,1], index: 25, kind: output, shape index: {1}]
  %s26 = inlined_call_operand.hbm [shape: f32[2,8,128], index: 26, kind: output, shape index: {2}]
  %27 = xla_tuple %s24, %s25, %s26
  %s28 = sld [smem:[#allocation0]]
  $region142: #{tpu_custom_call.1} parent=0
    _
  %s30 = ssub.s32 1, %s28
  %s31 = scalar_select 0, %s30, %s28
  %v32 = vstv %s23
  %33 = vst [vmem:[#allocation2] sm:$0x1] %v32
  $region1: #{tpu_custom_call.1} parent=0
    #allocation3 [shape = 'u8[65536]{0}', space=vmem, size = 0x10000, scoped, tag = 'input window, operand 5, single buffered']
    #allocation4 [shape = 's32[1]{0}', space=sflag, size = 0x4, scoped, tag = 'scoped memory for tpu_custom_call.1']
    #allocation5 [shape = 's32[1]{0}', space=sflag, size = 0x4, scoped, tag = 'scoped memory for tpu_custom_call.1']
    #allocation6 [shape = 'u8[196608]{0}', space=vmem, size = 0x30000, scoped, tag = 'input window, operand 9, single buffered']
    #allocation7 [shape = 's32[1]{0}', space=sflag, size = 0x4, scoped, tag = 'scoped memory for tpu_custom_call.1']
    #allocation8 [shape = 'u8[196608]{0}', space=vmem, size = 0x30000, scoped, tag = 'input window, operand 10, single buffered']
    #allocation9 [shape = 'u8[196608]{0}', space=vmem, size = 0x30000, scoped, tag = 'input window, operand 13, single buffered']
    #allocation10 [shape = 's32[1]{0}', space=sflag, size = 0x4, scoped, tag = 'scoped memory for tpu_custom_call.1']
    #allocation11 [shape = 'u8[196608]{0}', space=vmem, size = 0x30000, scoped, tag = 'input window, operand 14, single buffered']
    #allocation12 [shape = 'u8[4096]{0}', space=vmem, size = 0x1000, scoped, tag = 'output window, operand 0, single buffered']
    #allocation13 [shape = 'u8[8192]{0}', space=vmem, size = 0x2000, scoped, tag = 'output window, operand 2, single buffered']
    #allocation14 [shape = 's32[1]{0}', space=sflag, size = 0x4, scoped, tag = 'scoped memory for tpu_custom_call.1']
    %34 = vsyncpa [#allocation4], 0
    %35 = vsyncpa [#allocation7], 0
    %36 = vsyncpa [#allocation10], 0
    %37 = vsyncpa [#allocation5], 0
    %38 = vsyncpa [#allocation14], 0
    // Predicated region
    $region2: #{tpu_custom_call.1} parent=1 // pred_check
      _
    $region3: #{tpu_custom_call.1} parent=1 // pred_check_branch
      %40 = sbr.rel (0) target = $region5
    $region4: #{tpu_custom_call.1} parent=1 // pred_region
      _
    $region5: #{tpu_custom_call.1} parent=1 // pred_fallthru
      _
    // Predicated region
    $region6: #{tpu_custom_call.1} parent=1 // pred_check
      _
    $region7: #{tpu_custom_call.1} parent=1 // pred_check_branch
      %42 = sbr.rel (0) target = $region9
    $region8: #{tpu_custom_call.1} parent=1 // pred_region
      _
    $region9: #{tpu_custom_call.1} parent=1 // pred_fallthru
      _
    // Predicated region
    $region10: #{tpu_custom_call.1} parent=1 // pred_check
      _
    $region11: #{tpu_custom_call.1} parent=1 // pred_check_branch
      %44 = sbr.rel (0) target = $region13
    $region12: #{tpu_custom_call.1} parent=1 // pred_region
      _
    $region13: #{tpu_custom_call.1} parent=1 // pred_fallthru
      _
    // Predicated region
    $region14: #{tpu_custom_call.1} parent=1 // pred_check
      _
    $region15: #{tpu_custom_call.1} parent=1 // pred_check_branch
      %46 = sbr.rel (0) target = $region17
    $region16: #{tpu_custom_call.1} parent=1 // pred_region
      _
    $region17: #{tpu_custom_call.1} parent=1 // pred_fallthru
      _
    // Predicated region
    $region18: #{tpu_custom_call.1} parent=1 // pred_check
      _
    $region19: #{tpu_custom_call.1} parent=1 // pred_check_branch
      %48 = sbr.rel (0) target = $region21
    $region20: #{tpu_custom_call.1} parent=1 // pred_region
      _
    $region21: #{tpu_custom_call.1} parent=1 // pred_fallthru
      _
    // Predicated region
    $region22: #{tpu_custom_call.1} parent=1 // pred_check
      _
    $region23: #{tpu_custom_call.1} parent=1 // pred_check_branch
      %50 = sbr.rel (0) target = $region25
    $region24: #{tpu_custom_call.1} parent=1 // pred_region
      %s52 = ssub.s32 2048, 2048
      %53 = vsyncadd [#allocation4], %s52
      %s54 = sshll.u32 [#allocation3], 4
      %s55 = int_to_ptr.vmem [resolvable:$true] %s54
      %60 = dma.hbm_to_vmem [thread:$0]  %s5, 2048, %s55, [#allocation4], 128, 128, 8
    $region25: #{tpu_custom_call.1} parent=1 // pred_fallthru
      _
    // Predicated region
    $region26: #{tpu_custom_call.1} parent=1 // pred_check
      _
    $region27: #{tpu_custom_call.1} parent=1 // pred_check_branch
      %62 = sbr.rel (0) target = $region29
    $region28: #{tpu_custom_call.1} parent=1 // pred_region
      _
    $region29: #{tpu_custom_call.1} parent=1 // pred_fallthru
      _
    // Predicated region
    $region30: #{tpu_custom_call.1} parent=1 // pred_check
      _
    $region31: #{tpu_custom_call.1} parent=1 // pred_check_branch
      %64 = sbr.rel (0) target = $region33
    $region32: #{tpu_custom_call.1} parent=1 // pred_region
      _
    $region33: #{tpu_custom_call.1} parent=1 // pred_fallthru
      _
    // Predicated region
    $region34: #{tpu_custom_call.1} parent=1 // pred_check
      _
    $region35: #{tpu_custom_call.1} parent=1 // pred_check_branch
      %66 = sbr.rel (0) target = $region37
    $region36: #{tpu_custom_call.1} parent=1 // pred_region
      _
    $region37: #{tpu_custom_call.1} parent=1 // pred_fallthru
      _
    // Predicated region
    $region38: #{tpu_custom_call.1} parent=1 // pred_check
      _
    $region39: #{tpu_custom_call.1} parent=1 // pred_check_branch
      %68 = sbr.rel (0) target = $region41
    $region40: #{tpu_custom_call.1} parent=1 // pred_region
      %s70 = ssub.s32 6144, 6144
      %71 = vsyncadd [#allocation7], %s70
      %s72 = sshll.u32 [#allocation6], 4
      %s73 = int_to_ptr.vmem [resolvable:$true] %s72
      %78 = dma.hbm_to_vmem [thread:$0]  %s9, 6144, %s73, [#allocation7], 384, 384, 24
    $region41: #{tpu_custom_call.1} parent=1 // pred_fallthru
      _
    // Predicated region
    $region42: #{tpu_custom_call.1} parent=1 // pred_check
      _
    $region43: #{tpu_custom_call.1} parent=1 // pred_check_branch
      %80 = sbr.rel (0) target = $region45
    $region44: #{tpu_custom_call.1} parent=1 // pred_region
      %s82 = ssub.s32 6144, 6144
      %83 = vsyncadd [#allocation7], %s82
      %s84 = sshll.u32 [#allocation8], 4
      %s85 = int_to_ptr.vmem [resolvable:$true] %s84
      %90 = dma.hbm_to_vmem [thread:$0]  %s10, 6144, %s85, [#allocation7], 384, 384, 24
    $region45: #{tpu_custom_call.1} parent=1 // pred_fallthru
      _
    // Predicated region
    $region46: #{tpu_custom_call.1} parent=1 // pred_check
      _
    $region47: #{tpu_custom_call.1} parent=1 // pred_check_branch
      %92 = sbr.rel (0) target = $region49
    $region48: #{tpu_custom_call.1} parent=1 // pred_region
      _
    $region49: #{tpu_custom_call.1} parent=1 // pred_fallthru
      _
    // Predicated region
    $region50: #{tpu_custom_call.1} parent=1 // pred_check
      _
    $region51: #{tpu_custom_call.1} parent=1 // pred_check_branch
      %94 = sbr.rel (0) target = $region53
    $region52: #{tpu_custom_call.1} parent=1 // pred_region
      _
    $region53: #{tpu_custom_call.1} parent=1 // pred_fallthru
      _
    // Predicated region
    $region54: #{tpu_custom_call.1} parent=1 // pred_check
      _
    $region55: #{tpu_custom_call.1} parent=1 // pred_check_branch
      %96 = sbr.rel (0) target = $region57
    $region56: #{tpu_custom_call.1} parent=1 // pred_region
      %s98 = ssub.s32 6144, 6144
      %99 = vsyncadd [#allocation10], %s98
      %s100 = sshll.u32 [#allocation9], 4
      %s101 = int_to_ptr.vmem [resolvable:$true] %s100
      %106 = dma.hbm_to_vmem [thread:$0]  %s13, 6144, %s101, [#allocation10], 384, 384, 24
    $region57: #{tpu_custom_call.1} parent=1 // pred_fallthru
      _
    // Predicated region
    $region58: #{tpu_custom_call.1} parent=1 // pred_check
      _
    $region59: #{tpu_custom_call.1} parent=1 // pred_check_branch
      %108 = sbr.rel (0) target = $region61
    $region60: #{tpu_custom_call.1} parent=1 // pred_region
      %s110 = ssub.s32 6144, 6144
      %111 = vsyncadd [#allocation10], %s110
      %s112 = sshll.u32 [#allocation11], 4
      %s113 = int_to_ptr.vmem [resolvable:$true] %s112
      %118 = dma.hbm_to_vmem [thread:$0]  %s14, 6144, %s113, [#allocation10], 384, 384, 24
    $region61: #{tpu_custom_call.1} parent=1 // pred_fallthru
      _
    // Predicated region
    $region62: #{tpu_custom_call.1} parent=1 // pred_check
      _
    $region63: #{tpu_custom_call.1} parent=1 // pred_check_branch
      %120 = sbr.rel (0) target = $region65
    $region64: #{tpu_custom_call.1} parent=1 // pred_region
      _
    $region65: #{tpu_custom_call.1} parent=1 // pred_fallthru
      _
    // Predicated region
    $region66: #{tpu_custom_call.1} parent=1 // pred_check
      _
    $region67: #{tpu_custom_call.1} parent=1 // pred_check_branch
      %122 = sbr.rel (0) target = $region69
    $region68: #{tpu_custom_call.1} parent=1 // pred_region
      _
    $region69: #{tpu_custom_call.1} parent=1 // pred_fallthru
      _
    // Predicated region
    $region70: #{tpu_custom_call.1} parent=1 // pred_check
      _
    $region71: #{tpu_custom_call.1} parent=1 // pred_check_branch
      %124 = sbr.rel (0) target = $region73
    $region72: #{tpu_custom_call.1} parent=1 // pred_region
      _
    $region73: #{tpu_custom_call.1} parent=1 // pred_fallthru
      _
    // Predicated region
    $region74: #{tpu_custom_call.1} parent=1 // pred_check
      _
    $region75: #{tpu_custom_call.1} parent=1 // pred_check_branch
      %126 = sbr.rel (0) target = $region77
    $region76: #{tpu_custom_call.1} parent=1 // pred_region
      _
    $region77: #{tpu_custom_call.1} parent=1 // pred_fallthru
      _
    // Predicated region
    $region78: #{tpu_custom_call.1} parent=1 // pred_check
      _
    $region79: #{tpu_custom_call.1} parent=1 // pred_check_branch
      %128 = sbr.rel (0) target = $region81
    $region80: #{tpu_custom_call.1} parent=1 // pred_region
      _
    $region81: #{tpu_custom_call.1} parent=1 // pred_fallthru
      _
    // Predicated region
    $region82: #{tpu_custom_call.1} parent=1 // pred_check
      _
    $region83: #{tpu_custom_call.1} parent=1 // pred_check_branch
      %130 = sbr.rel (0) target = $region85
    $region84: #{tpu_custom_call.1} parent=1 // pred_region
      _
    $region85: #{tpu_custom_call.1} parent=1 // pred_fallthru
      _
    // Predicated region
    $region86: #{tpu_custom_call.1} parent=1 // pred_check
      _
    $region87: #{tpu_custom_call.1} parent=1 // pred_check_branch
      %132 = sbr.rel (0) target = $region89
    $region88: #{tpu_custom_call.1} parent=1 // pred_region
      _
    $region89: #{tpu_custom_call.1} parent=1 // pred_fallthru
      _
    // Predicated region
    $region90: #{tpu_custom_call.1} parent=1 // pred_check
      _
    $region91: #{tpu_custom_call.1} parent=1 // pred_check_branch
      %134 = sbr.rel (0) target = $region93
    $region92: #{tpu_custom_call.1} parent=1 // pred_region
      _
    $region93: #{tpu_custom_call.1} parent=1 // pred_fallthru
      _
    // Predicated region
    $region94: #{tpu_custom_call.1} parent=1 // pred_check
      _
    $region95: #{tpu_custom_call.1} parent=1 // pred_check_branch
      %136 = sbr.rel (0) target = $region97
    $region96: #{tpu_custom_call.1} parent=1 // pred_region
      _
    $region97: #{tpu_custom_call.1} parent=1 // pred_fallthru
      _
    // Predicated region
    $region98: #{tpu_custom_call.1} parent=1 // pred_check
      _
    $region99: #{tpu_custom_call.1} parent=1 // pred_check_branch
      %138 = sbr.rel (0) target = $region101
    $region100: #{tpu_custom_call.1} parent=1 // pred_region
      %139 = dma.done [#allocation4], 2048
    $region101: #{tpu_custom_call.1} parent=1 // pred_fallthru
      _
    // Predicated region
    $region102: #{tpu_custom_call.1} parent=1 // pred_check
      _
    $region103: #{tpu_custom_call.1} parent=1 // pred_check_branch
      %141 = sbr.rel (0) target = $region105
    $region104: #{tpu_custom_call.1} parent=1 // pred_region
      %142 = dma.done [#allocation7], 6144
    $region105: #{tpu_custom_call.1} parent=1 // pred_fallthru
      _
    // Predicated region
    $region106: #{tpu_custom_call.1} parent=1 // pred_check
      _
    $region107: #{tpu_custom_call.1} parent=1 // pred_check_branch
      %144 = sbr.rel (0) target = $region109
    $region108: #{tpu_custom_call.1} parent=1 // pred_region
      %145 = dma.done [#allocation7], 6144
    $region109: #{tpu_custom_call.1} parent=1 // pred_fallthru
      _
    // Predicated region
    $region110: #{tpu_custom_call.1} parent=1 // pred_check
      _
    $region111: #{tpu_custom_call.1} parent=1 // pred_check_branch
      %147 = sbr.rel (0) target = $region113
    $region112: #{tpu_custom_call.1} parent=1 // pred_region
      %148 = dma.done [#allocation10], 6144
    $region113: #{tpu_custom_call.1} parent=1 // pred_fallthru
      _
    // Predicated region
    $region114: #{tpu_custom_call.1} parent=1 // pred_check
      _
    $region115: #{tpu_custom_call.1} parent=1 // pred_check_branch
      %150 = sbr.rel (0) target = $region117
    $region116: #{tpu_custom_call.1} parent=1 // pred_region
      %151 = dma.done [#allocation10], 6144
    $region117: #{tpu_custom_call.1} parent=1 // pred_fallthru
      _
    %v152 = vld [vmem:[%s0] sm:$0xff]
    %v153 = vld [vmem:[%s1] sm:$0xff]
    %v154 = vld [vmem:[%s1 + $0x8] sm:$0xff]
    %v155 = vld [vmem:[%s2] sm:$0x1]
    %v157 = vlaneseq
    %v158 = vshrl.u32 %v157, 7
    %v159 = vsub.s32 0, %v158
    %v160 = vrot.slane %v155, %v159
    %vm162 = vcmask 130048
    %v164 = vsel %vm162, %v152, 0
    %166 = vmatprep.subr.mxu0 0.0
    %167 = vmatpush1.msra.mxu0 %v153
    %168 = vmatprep.subr.mxu0 0.0
    %169 = vmatpush1.msra.mxu0 %v154
    %170 = vmatprep.subr.mxu0 0.0
    %171 = vmatpush1.msra.mxu0 0.0
    %172 = vmatprep.subr.mxu0 0.0
    %173 = vmatpush1.msra.mxu0 0.0
    %174 = vmatprep.subr.mxu0 0.0
    %175 = vmatpush1.msra.mxu0 0.0
    %176 = vmatprep.subr.mxu0 0.0
    %177 = vmatpush1.msra.mxu0 0.0
    %178 = vmatprep.subr.mxu0 0.0
    %179 = vmatpush1.msra.mxu0 0.0
    %180 = vmatprep.subr.mxu0 0.0
    %181 = vmatpush1.msra.mxu0 0.0
    %182 = vmatprep.subr.mxu0 0.0
    %183 = vmatpush1.msra.mxu0 0.0
    %184 = vmatprep.subr.mxu0 0.0
    %185 = vmatpush1.msra.mxu0 0.0
    %186 = vmatprep.subr.mxu0 0.0
    %187 = vmatpush1.msra.mxu0 0.0
    %188 = vmatprep.subr.mxu0 0.0
    %189 = vmatpush1.msra.mxu0 0.0
    %190 = vmatprep.subr.mxu0 0.0
    %191 = vmatpush1.msra.mxu0 0.0
    %192 = vmatprep.subr.mxu0 0.0
    %193 = vmatpush1.msra.mxu0 0.0
    %194 = vmatprep.subr.mxu0 0.0
    %195 = vmatpush1.msra.mxu0 0.0
    %196 = vmatprep.subr.mxu0 0.0
    %197 = vmatpush1.msra.mxu0 0.0
    %198 = vmatprep.subr.mxu0 0.0
    %199 = vmatpush1.msra.mxu0 0.0
    %200 = vmatprep.subr.mxu0 0.0
    %201 = vmatpush1.msra.mxu0 0.0
    %202 = vmatprep.subr.mxu0 0.0
    %203 = vmatpush1.msra.mxu0 0.0
    %204 = vmatprep.subr.mxu0 0.0
    %205 = vmatpush1.msra.mxu0 0.0
    %206 = vmatprep.subr.mxu0 0.0
    %207 = vmatpush1.msra.mxu0 0.0
    %208 = vmatprep.subr.mxu0 0.0
    %209 = vmatpush1.msra.mxu0 0.0
    %210 = vmatprep.subr.mxu0 0.0
    %211 = vmatpush1.msra.mxu0 0.0
    %212 = vmatprep.subr.mxu0 0.0
    %213 = vmatpush1.msra.mxu0 0.0
    %214 = vmatprep.subr.mxu0 0.0
    %215 = vmatpush1.msra.mxu0 0.0
    %216 = vmatprep.subr.mxu0 0.0
    %217 = vmatpush1.msra.mxu0 0.0
    %218 = vmatprep.subr.mxu0 0.0
    %219 = vmatpush1.msra.mxu0 0.0
    %220 = vmatprep.subr.mxu0 0.0
    %221 = vmatpush1.msra.mxu0 0.0
    %222 = vmatprep.subr.mxu0 0.0
    %223 = vmatpush1.msra.mxu0 0.0
    %224 = vmatprep.subr.mxu0 0.0
    %225 = vmatpush1.msra.mxu0 0.0
    %226 = vmatprep.subr.mxu0 0.0
    %227 = vmatpush1.msra.mxu0 0.0
    %228 = vmatprep.subr.mxu0 0.0
    %229 = vmatpush1.msra.mxu0 0.0
    %230 = vmatprep.mubr.f32.mxu0 0.0
    %231 = vmatmul.mubr.f32.gmra.mrb[0].mxu0 %v164
    %v232 = vpop.f32.mrb[0].mxu0
    %v233 = vadd.f32 %v160, %v232
    %v234 = vpop.f32.mrb[0].mxu0
    %235 = vdwg.mxu0
    %v236 = vld [vmem:[%s3] sm:$0x1]
    %v237 = vld [vmem:[%s4] sm:$0x1]
    %238 = vadd.xlane.f32.xlu0 %v233
    %v239 = vpop.xlane.xlu0 %238
    %v240 = vrcp.pop 128.0
    %v241 = vmul.f32 %v239, %v240
    %v242 = vsub.f32 %v233, %v241
    %v243 = vmul.f32 %v242, %v242
    %244 = vadd.xlane.f32.xlu0 %v243
    %v245 = vpop.xlane.xlu0 %244
    %v246 = vmul.f32 %v245, %v240
    %v247 = vadd.f32 %v246, 1e-05
    %v248 = vrsqrt.pop %v247
    %v249 = vmul.f32 %v242, %v248
    %v251 = vlaneseq
    %v252 = vshrl.u32 %v251, 7
    %v253 = vsub.s32 0, %v252
    %v254 = vrot.slane %v236, %v253
    %v256 = vmul.f32 %v249, %v254
    %v258 = vlaneseq
    %v259 = vshrl.u32 %v258, 7
    %v260 = vsub.s32 0, %v259
    %v261 = vrot.slane %v237, %v260
    %v263 = vadd.f32 %v256, %v261
    %v264 = vmax.f32 %v263, 0.0
    %v265 = vld [vmem:[#allocation3] sm:$0xff]
    %v266 = vld [vmem:[#allocation3 + $0x8] sm:$0xff]
    %v267 = vld [vmem:[#allocation3 + $0x10] sm:$0xff]
    %v268 = vld [vmem:[#allocation3 + $0x18] sm:$0xff]
    %v269 = vld [vmem:[#allocation3 + $0x20] sm:$0xff]
    %v270 = vld [vmem:[#allocation3 + $0x28] sm:$0xff]
    %v271 = vld [vmem:[#allocation3 + $0x30] sm:$0xff]
    %v272 = vld [vmem:[#allocation3 + $0x38] sm:$0xff]
    %v273 = vld [vmem:[#allocation3 + $0x40] sm:$0xff]
    %v274 = vld [vmem:[#allocation3 + $0x48] sm:$0xff]
    %v275 = vld [vmem:[#allocation3 + $0x50] sm:$0xff]
    %v276 = vld [vmem:[#allocation3 + $0x58] sm:$0xff]
    %v277 = vld [vmem:[#allocation3 + $0x60] sm:$0xff]
    %v278 = vld [vmem:[#allocation3 + $0x68] sm:$0xff]
    %v279 = vld [vmem:[#allocation3 + $0x70] sm:$0xff]
    %v280 = vld [vmem:[#allocation3 + $0x78] sm:$0xff]
    %v281 = vld [vmem:[%s6] sm:$0x1]
    %v283 = vlaneseq
    %v284 = vshrl.u32 %v283, 7
    %v285 = vsub.s32 0, %v284
    %v286 = vrot.slane %v281, %v285
    %288 = vmatprep.subr.mxu0 0.0
    %289 = vmatpush1.msra.mxu0 %v265
    %290 = vmatprep.subr.mxu0 0.0
    %291 = vmatpush1.msra.mxu0 %v266
    %292 = vmatprep.subr.mxu0 0.0
    %293 = vmatpush1.msra.mxu0 %v267
    %294 = vmatprep.subr.mxu0 0.0
    %295 = vmatpush1.msra.mxu0 %v268
    %296 = vmatprep.subr.mxu0 0.0
    %297 = vmatpush1.msra.mxu0 %v269
    %298 = vmatprep.subr.mxu0 0.0
    %299 = vmatpush1.msra.mxu0 %v270
    %300 = vmatprep.subr.mxu0 0.0
    %301 = vmatpush1.msra.mxu0 %v271
    %302 = vmatprep.subr.mxu0 0.0
    %303 = vmatpush1.msra.mxu0 %v272
    %304 = vmatprep.subr.mxu0 0.0
    %305 = vmatpush1.msra.mxu0 %v273
    %306 = vmatprep.subr.mxu0 0.0
    %307 = vmatpush1.msra.mxu0 %v274
    %308 = vmatprep.subr.mxu0 0.0
    %309 = vmatpush1.msra.mxu0 %v275
    %310 = vmatprep.subr.mxu0 0.0
    %311 = vmatpush1.msra.mxu0 %v276
    %312 = vmatprep.subr.mxu0 0.0
    %313 = vmatpush1.msra.mxu0 %v277
    %314 = vmatprep.subr.mxu0 0.0
    %315 = vmatpush1.msra.mxu0 %v278
    %316 = vmatprep.subr.mxu0 0.0
    %317 = vmatpush1.msra.mxu0 %v279
    %318 = vmatprep.subr.mxu0 0.0
    %319 = vmatpush1.msra.mxu0 %v280
    %320 = vmatprep.subr.mxu0 0.0
    %321 = vmatpush1.msra.mxu0 0.0
    %322 = vmatprep.subr.mxu0 0.0
    %323 = vmatpush1.msra.mxu0 0.0
    %324 = vmatprep.subr.mxu0 0.0
    %325 = vmatpush1.msra.mxu0 0.0
    %326 = vmatprep.subr.mxu0 0.0
    %327 = vmatpush1.msra.mxu0 0.0
    %328 = vmatprep.subr.mxu0 0.0
    %329 = vmatpush1.msra.mxu0 0.0
    %330 = vmatprep.subr.mxu0 0.0
    %331 = vmatpush1.msra.mxu0 0.0
    %332 = vmatprep.subr.mxu0 0.0
    %333 = vmatpush1.msra.mxu0 0.0
    %334 = vmatprep.subr.mxu0 0.0
    %335 = vmatpush1.msra.mxu0 0.0
    %336 = vmatprep.subr.mxu0 0.0
    %337 = vmatpush1.msra.mxu0 0.0
    %338 = vmatprep.subr.mxu0 0.0
    %339 = vmatpush1.msra.mxu0 0.0
    %340 = vmatprep.subr.mxu0 0.0
    %341 = vmatpush1.msra.mxu0 0.0
    %342 = vmatprep.subr.mxu0 0.0
    %343 = vmatpush1.msra.mxu0 0.0
    %344 = vmatprep.subr.mxu0 0.0
    %345 = vmatpush1.msra.mxu0 0.0
    %346 = vmatprep.subr.mxu0 0.0
    %347 = vmatpush1.msra.mxu0 0.0
    %348 = vmatprep.subr.mxu0 0.0
    %349 = vmatpush1.msra.mxu0 0.0
    %350 = vmatprep.subr.mxu0 0.0
    %351 = vmatpush1.msra.mxu0 0.0
    %352 = vmatprep.mubr.f32.mxu0 0.0
    %353 = vmatmul.mubr.f32.gmra.mrb[0].mxu0 %v264
    %v354 = vpop.f32.mrb[0].mxu0
    %v355 = vadd.f32 %v286, %v354
    %v356 = vpop.f32.mrb[0].mxu0
    %357 = vdwg.mxu0
    %v358 = vld [vmem:[%s7] sm:$0x1]
    %v359 = vld [vmem:[%s8] sm:$0x1]
    %360 = vadd.xlane.f32.xlu0 %v355
    %v361 = vpop.xlane.xlu0 %360
    %v362 = vmul.f32 %v361, %v240
    %v363 = vsub.f32 %v355, %v362
    %v364 = vmul.f32 %v363, %v363
    %365 = vadd.xlane.f32.xlu0 %v364
    %v366 = vpop.xlane.xlu0 %365
    %v367 = vmul.f32 %v366, %v240
    %v368 = vadd.f32 %v367, 1e-05
    %v369 = vrsqrt.pop %v368
    %v370 = vmul.f32 %v363, %v369
    %v372 = vlaneseq
    %v373 = vshrl.u32 %v372, 7
    %v374 = vsub.s32 0, %v373
    %v375 = vrot.slane %v358, %v374
    %v377 = vmul.f32 %v370, %v375
    %v379 = vlaneseq
    %v380 = vshrl.u32 %v379, 7
    %v381 = vsub.s32 0, %v380
    %v382 = vrot.slane %v359, %v381
    %v384 = vadd.f32 %v377, %v382
    %v385 = vmax.f32 %v384, 0.0
    %v386 = vld [vmem:[%s17] sm:$0xff]
    %s387 = scalar_lea.vmem %s17, 8
    %v388 = vld [vmem:[%s387] sm:$0xff]
    %v389 = vld [vmem:[#allocation6] sm:$0xff]
    %v390 = vld [vmem:[#allocation6 + $0x8] sm:$0xff]
    %v391 = vld [vmem:[#allocation6 + $0x10] sm:$0xff]
    %v392 = vld [vmem:[#allocation6 + $0x18] sm:$0xff]
    %v393 = vld [vmem:[#allocation6 + $0x20] sm:$0xff]
    %v394 = vld [vmem:[#allocation6 + $0x28] sm:$0xff]
    %v395 = vld [vmem:[#allocation6 + $0x30] sm:$0xff]
    %v396 = vld [vmem:[#allocation6 + $0x38] sm:$0xff]
    %v397 = vld [vmem:[#allocation6 + $0x40] sm:$0xff]
    %v398 = vld [vmem:[#allocation6 + $0x48] sm:$0xff]
    %v399 = vld [vmem:[#allocation6 + $0x50] sm:$0xff]
    %v400 = vld [vmem:[#allocation6 + $0x58] sm:$0xff]
    %v401 = vld [vmem:[#allocation6 + $0x60] sm:$0xff]
    %v402 = vld [vmem:[#allocation6 + $0x68] sm:$0xff]
    %v403 = vld [vmem:[#allocation6 + $0x70] sm:$0xff]
    %v404 = vld [vmem:[#allocation6 + $0x78] sm:$0xff]
    %v405 = vld [vmem:[#allocation6 + $0x80] sm:$0xff]
    %v406 = vld [vmem:[#allocation6 + $0x88] sm:$0xff]
    %v407 = vld [vmem:[#allocation6 + $0x90] sm:$0xff]
    %v408 = vld [vmem:[#allocation6 + $0x98] sm:$0xff]
    %v409 = vld [vmem:[#allocation6 + $0xa0] sm:$0xff]
    %v410 = vld [vmem:[#allocation6 + $0xa8] sm:$0xff]
    %v411 = vld [vmem:[#allocation6 + $0xb0] sm:$0xff]
    %v412 = vld [vmem:[#allocation6 + $0xb8] sm:$0xff]
    %v413 = vld [vmem:[#allocation6 + $0xc0] sm:$0xff]
    %v414 = vld [vmem:[#allocation6 + $0xc8] sm:$0xff]
    %v415 = vld [vmem:[#allocation6 + $0xd0] sm:$0xff]
    %v416 = vld [vmem:[#allocation6 + $0xd8] sm:$0xff]
    %v417 = vld [vmem:[#allocation6 + $0xe0] sm:$0xff]
    %v418 = vld [vmem:[#allocation6 + $0xe8] sm:$0xff]
    %v419 = vld [vmem:[#allocation6 + $0xf0] sm:$0xff]
    %v420 = vld [vmem:[#allocation6 + $0xf8] sm:$0xff]
    %v421 = vld [vmem:[#allocation6 + $0x100] sm:$0xff]
    %v422 = vld [vmem:[#allocation6 + $0x108] sm:$0xff]
    %v423 = vld [vmem:[#allocation6 + $0x110] sm:$0xff]
    %v424 = vld [vmem:[#allocation6 + $0x118] sm:$0xff]
    %v425 = vld [vmem:[#allocation6 + $0x120] sm:$0xff]
    %v426 = vld [vmem:[#allocation6 + $0x128] sm:$0xff]
    %v427 = vld [vmem:[#allocation6 + $0x130] sm:$0xff]
    %v428 = vld [vmem:[#allocation6 + $0x138] sm:$0xff]
    %v429 = vld [vmem:[#allocation6 + $0x140] sm:$0xff]
    %v430 = vld [vmem:[#allocation6 + $0x148] sm:$0xff]
    %v431 = vld [vmem:[#allocation6 + $0x150] sm:$0xff]
    %v432 = vld [vmem:[#allocation6 + $0x158] sm:$0xff]
    %v433 = vld [vmem:[#allocation6 + $0x160] sm:$0xff]
    %v434 = vld [vmem:[#allocation6 + $0x168] sm:$0xff]
    %v435 = vld [vmem:[#allocation6 + $0x170] sm:$0xff]
    %v436 = vld [vmem:[#allocation6 + $0x178] sm:$0xff]
    %v437 = vld [vmem:[#allocation8] sm:$0xff]
    %v438 = vld [vmem:[#allocation8 + $0x8] sm:$0xff]
    %v439 = vld [vmem:[#allocation8 + $0x10] sm:$0xff]
    %v440 = vld [vmem:[#allocation8 + $0x18] sm:$0xff]
    %v441 = vld [vmem:[#allocation8 + $0x20] sm:$0xff]
    %v442 = vld [vmem:[#allocation8 + $0x28] sm:$0xff]
    %v443 = vld [vmem:[#allocation8 + $0x30] sm:$0xff]
    %v444 = vld [vmem:[#allocation8 + $0x38] sm:$0xff]
    %v445 = vld [vmem:[#allocation8 + $0x40] sm:$0xff]
    %v446 = vld [vmem:[#allocation8 + $0x48] sm:$0xff]
    %v447 = vld [vmem:[#allocation8 + $0x50] sm:$0xff]
    %v448 = vld [vmem:[#allocation8 + $0x58] sm:$0xff]
    %v449 = vld [vmem:[#allocation8 + $0x60] sm:$0xff]
    %v450 = vld [vmem:[#allocation8 + $0x68] sm:$0xff]
    %v451 = vld [vmem:[#allocation8 + $0x70] sm:$0xff]
    %v452 = vld [vmem:[#allocation8 + $0x78] sm:$0xff]
    %v453 = vld [vmem:[#allocation8 + $0x80] sm:$0xff]
    %v454 = vld [vmem:[#allocation8 + $0x88] sm:$0xff]
    %v455 = vld [vmem:[#allocation8 + $0x90] sm:$0xff]
    %v456 = vld [vmem:[#allocation8 + $0x98] sm:$0xff]
    %v457 = vld [vmem:[#allocation8 + $0xa0] sm:$0xff]
    %v458 = vld [vmem:[#allocation8 + $0xa8] sm:$0xff]
    %v459 = vld [vmem:[#allocation8 + $0xb0] sm:$0xff]
    %v460 = vld [vmem:[#allocation8 + $0xb8] sm:$0xff]
    %v461 = vld [vmem:[#allocation8 + $0xc0] sm:$0xff]
    %v462 = vld [vmem:[#allocation8 + $0xc8] sm:$0xff]
    %v463 = vld [vmem:[#allocation8 + $0xd0] sm:$0xff]
    %v464 = vld [vmem:[#allocation8 + $0xd8] sm:$0xff]
    %v465 = vld [vmem:[#allocation8 + $0xe0] sm:$0xff]
    %v466 = vld [vmem:[#allocation8 + $0xe8] sm:$0xff]
    %v467 = vld [vmem:[#allocation8 + $0xf0] sm:$0xff]
    %v468 = vld [vmem:[#allocation8 + $0xf8] sm:$0xff]
    %v469 = vld [vmem:[#allocation8 + $0x100] sm:$0xff]
    %v470 = vld [vmem:[#allocation8 + $0x108] sm:$0xff]
    %v471 = vld [vmem:[#allocation8 + $0x110] sm:$0xff]
    %v472 = vld [vmem:[#allocation8 + $0x118] sm:$0xff]
    %v473 = vld [vmem:[#allocation8 + $0x120] sm:$0xff]
    %v474 = vld [vmem:[#allocation8 + $0x128] sm:$0xff]
    %v475 = vld [vmem:[#allocation8 + $0x130] sm:$0xff]
    %v476 = vld [vmem:[#allocation8 + $0x138] sm:$0xff]
    %v477 = vld [vmem:[#allocation8 + $0x140] sm:$0xff]
    %v478 = vld [vmem:[#allocation8 + $0x148] sm:$0xff]
    %v479 = vld [vmem:[#allocation8 + $0x150] sm:$0xff]
    %v480 = vld [vmem:[#allocation8 + $0x158] sm:$0xff]
    %v481 = vld [vmem:[#allocation8 + $0x160] sm:$0xff]
    %v482 = vld [vmem:[#allocation8 + $0x168] sm:$0xff]
    %v483 = vld [vmem:[#allocation8 + $0x170] sm:$0xff]
    %v484 = vld [vmem:[#allocation8 + $0x178] sm:$0xff]
    %v485 = vld [vmem:[%s11] sm:$0x7]
    %v486 = vld [vmem:[%s12] sm:$0x7]
    %v488 = vlaneseq
    %v489 = vshrl.u32 %v488, 7
    %v490 = vsub.s32 0, %v489
    %v491 = vrot.slane %v485, %v490
    %v492 = vlaneseq
    %v493 = vshrl.u32 %v492, 7
    %v494 = vsub.s32 1, %v493
    %v495 = vrot.slane %v485, %v494
    %v496 = vlaneseq
    %v497 = vshrl.u32 %v496, 7
    %v498 = vsub.s32 2, %v497
    %v499 = vrot.slane %v485, %v498
    %503 = vmatprep.subr.mxu0 %v390
    %504 = vmatpush1.msra.mxu0 %v389
    %505 = vmatprep.subr.mxu0 %v393
    %506 = vmatpush1.msra.mxu0 %v392
    %507 = vmatprep.subr.mxu0 %v396
    %508 = vmatpush1.msra.mxu0 %v395
    %509 = vmatprep.subr.mxu0 %v399
    %510 = vmatpush1.msra.mxu0 %v398
    %511 = vmatprep.subr.mxu0 %v402
    %512 = vmatpush1.msra.mxu0 %v401
    %513 = vmatprep.subr.mxu0 %v405
    %514 = vmatpush1.msra.mxu0 %v404
    %515 = vmatprep.subr.mxu0 %v408
    %516 = vmatpush1.msra.mxu0 %v407
    %517 = vmatprep.subr.mxu0 %v411
    %518 = vmatpush1.msra.mxu0 %v410
    %519 = vmatprep.subr.mxu0 %v414
    %520 = vmatpush1.msra.mxu0 %v413
    %521 = vmatprep.subr.mxu0 %v417
    %522 = vmatpush1.msra.mxu0 %v416
    %523 = vmatprep.subr.mxu0 %v420
    %524 = vmatpush1.msra.mxu0 %v419
    %525 = vmatprep.subr.mxu0 %v423
    %526 = vmatpush1.msra.mxu0 %v422
    %527 = vmatprep.subr.mxu0 %v426
    %528 = vmatpush1.msra.mxu0 %v425
    %529 = vmatprep.subr.mxu0 %v429
    %530 = vmatpush1.msra.mxu0 %v428
    %531 = vmatprep.subr.mxu0 %v432
    %532 = vmatpush1.msra.mxu0 %v431
    %533 = vmatprep.subr.mxu0 %v435
    %534 = vmatpush1.msra.mxu0 %v434
    %535 = vmatprep.subr.mxu0 0.0
    %536 = vmatpush1.msra.mxu0 0.0
    %537 = vmatprep.subr.mxu0 0.0
    %538 = vmatpush1.msra.mxu0 0.0
    %539 = vmatprep.subr.mxu0 0.0
    %540 = vmatpush1.msra.mxu0 0.0
    %541 = vmatprep.subr.mxu0 0.0
    %542 = vmatpush1.msra.mxu0 0.0
    %543 = vmatprep.subr.mxu0 0.0
    %544 = vmatpush1.msra.mxu0 0.0
    %545 = vmatprep.subr.mxu0 0.0
    %546 = vmatpush1.msra.mxu0 0.0
    %547 = vmatprep.subr.mxu0 0.0
    %548 = vmatpush1.msra.mxu0 0.0
    %549 = vmatprep.subr.mxu0 0.0
    %550 = vmatpush1.msra.mxu0 0.0
    %551 = vmatprep.subr.mxu0 0.0
    %552 = vmatpush1.msra.mxu0 0.0
    %553 = vmatprep.subr.mxu0 0.0
    %554 = vmatpush1.msra.mxu0 0.0
    %555 = vmatprep.subr.mxu0 0.0
    %556 = vmatpush1.msra.mxu0 0.0
    %557 = vmatprep.subr.mxu0 0.0
    %558 = vmatpush1.msra.mxu0 0.0
    %559 = vmatprep.subr.mxu0 0.0
    %560 = vmatpush1.msra.mxu0 0.0
    %561 = vmatprep.subr.mxu0 0.0
    %562 = vmatpush1.msra.mxu0 0.0
    %563 = vmatprep.subr.mxu0 0.0
    %564 = vmatpush1.msra.mxu0 0.0
    %565 = vmatprep.subr.mxu0 0.0
    %566 = vmatpush1.msra.mxu0 0.0
    %567 = vmatprep.mubr.f32.mxu0 0.0
    %568 = vmatmul.mubr.f32.gmra.mrb[0].mxu0 %v385
    %v569 = vpop.f32.mrb[0].mxu0
    %v570 = vadd.f32 %v491, %v569
    %v571 = vpop.f32.mrb[0].mxu0
    %v572 = vadd.f32 %v495, %v571
    %573 = vdwg.mxu0
    %574 = vmatprep.subr.mxu0 0.0
    %575 = vmatpush1.msra.mxu0 %v391
    %576 = vmatprep.subr.mxu0 0.0
    %577 = vmatpush1.msra.mxu0 %v394
    %578 = vmatprep.subr.mxu0 0.0
    %579 = vmatpush1.msra.mxu0 %v397
    %580 = vmatprep.subr.mxu0 0.0
    %581 = vmatpush1.msra.mxu0 %v400
    %582 = vmatprep.subr.mxu0 0.0
    %583 = vmatpush1.msra.mxu0 %v403
    %584 = vmatprep.subr.mxu0 0.0
    %585 = vmatpush1.msra.mxu0 %v406
    %586 = vmatprep.subr.mxu0 0.0
    %587 = vmatpush1.msra.mxu0 %v409
    %588 = vmatprep.subr.mxu0 0.0
    %589 = vmatpush1.msra.mxu0 %v412
    %590 = vmatprep.subr.mxu0 0.0
    %591 = vmatpush1.msra.mxu0 %v415
    %592 = vmatprep.subr.mxu0 0.0
    %593 = vmatpush1.msra.mxu0 %v418
    %594 = vmatprep.subr.mxu0 0.0
    %595 = vmatpush1.msra.mxu0 %v421
    %596 = vmatprep.subr.mxu0 0.0
    %597 = vmatpush1.msra.mxu0 %v424
    %598 = vmatprep.subr.mxu0 0.0
    %599 = vmatpush1.msra.mxu0 %v427
    %600 = vmatprep.subr.mxu0 0.0
    %601 = vmatpush1.msra.mxu0 %v430
    %602 = vmatprep.subr.mxu0 0.0
    %603 = vmatpush1.msra.mxu0 %v433
    %604 = vmatprep.subr.mxu0 0.0
    %605 = vmatpush1.msra.mxu0 %v436
    %606 = vmatprep.subr.mxu0 0.0
    %607 = vmatpush1.msra.mxu0 0.0
    %608 = vmatprep.subr.mxu0 0.0
    %609 = vmatpush1.msra.mxu0 0.0
    %610 = vmatprep.subr.mxu0 0.0
    %611 = vmatpush1.msra.mxu0 0.0
    %612 = vmatprep.subr.mxu0 0.0
    %613 = vmatpush1.msra.mxu0 0.0
    %614 = vmatprep.subr.mxu0 0.0
    %615 = vmatpush1.msra.mxu0 0.0
    %616 = vmatprep.subr.mxu0 0.0
    %617 = vmatpush1.msra.mxu0 0.0
    %618 = vmatprep.subr.mxu0 0.0
    %619 = vmatpush1.msra.mxu0 0.0
    %620 = vmatprep.subr.mxu0 0.0
    %621 = vmatpush1.msra.mxu0 0.0
    %622 = vmatprep.subr.mxu0 0.0
    %623 = vmatpush1.msra.mxu0 0.0
    %624 = vmatprep.subr.mxu0 0.0
    %625 = vmatpush1.msra.mxu0 0.0
    %626 = vmatprep.subr.mxu0 0.0
    %627 = vmatpush1.msra.mxu0 0.0
    %628 = vmatprep.subr.mxu0 0.0
    %629 = vmatpush1.msra.mxu0 0.0
    %630 = vmatprep.subr.mxu0 0.0
    %631 = vmatpush1.msra.mxu0 0.0
    %632 = vmatprep.subr.mxu0 0.0
    %633 = vmatpush1.msra.mxu0 0.0
    %634 = vmatprep.subr.mxu0 0.0
    %635 = vmatpush1.msra.mxu0 0.0
    %636 = vmatprep.subr.mxu0 0.0
    %637 = vmatpush1.msra.mxu0 0.0
    %638 = vmatprep.mubr.f32.mxu0 0.0
    %639 = vmatmul.mubr.f32.gmra.mrb[0].mxu0 %v385
    %v640 = vpop.f32.mrb[0].mxu0
    %v641 = vadd.f32 %v499, %v640
    %v642 = vpop.f32.mrb[0].mxu0
    %643 = vdwg.mxu0
    %v645 = vlaneseq
    %v646 = vshrl.u32 %v645, 7
    %v647 = vsub.s32 0, %v646
    %v648 = vrot.slane %v486, %v647
    %v649 = vlaneseq
    %v650 = vshrl.u32 %v649, 7
    %v651 = vsub.s32 1, %v650
    %v652 = vrot.slane %v486, %v651
    %v653 = vlaneseq
    %v654 = vshrl.u32 %v653, 7
    %v655 = vsub.s32 2, %v654
    %v656 = vrot.slane %v486, %v655
    %660 = vmatprep.subr.mxu0 %v438
    %661 = vmatpush1.msra.mxu0 %v437
    %662 = vmatprep.subr.mxu0 %v441
    %663 = vmatpush1.msra.mxu0 %v440
    %664 = vmatprep.subr.mxu0 %v444
    %665 = vmatpush1.msra.mxu0 %v443
    %666 = vmatprep.subr.mxu0 %v447
    %667 = vmatpush1.msra.mxu0 %v446
    %668 = vmatprep.subr.mxu0 %v450
    %669 = vmatpush1.msra.mxu0 %v449
    %670 = vmatprep.subr.mxu0 %v453
    %671 = vmatpush1.msra.mxu0 %v452
    %672 = vmatprep.subr.mxu0 %v456
    %673 = vmatpush1.msra.mxu0 %v455
    %674 = vmatprep.subr.mxu0 %v459
    %675 = vmatpush1.msra.mxu0 %v458
    %676 = vmatprep.subr.mxu0 %v462
    %677 = vmatpush1.msra.mxu0 %v461
    %678 = vmatprep.subr.mxu0 %v465
    %679 = vmatpush1.msra.mxu0 %v464
    %680 = vmatprep.subr.mxu0 %v468
    %681 = vmatpush1.msra.mxu0 %v467
    %682 = vmatprep.subr.mxu0 %v471
    %683 = vmatpush1.msra.mxu0 %v470
    %684 = vmatprep.subr.mxu0 %v474
    %685 = vmatpush1.msra.mxu0 %v473
    %686 = vmatprep.subr.mxu0 %v477
    %687 = vmatpush1.msra.mxu0 %v476
    %688 = vmatprep.subr.mxu0 %v480
    %689 = vmatpush1.msra.mxu0 %v479
    %690 = vmatprep.subr.mxu0 %v483
    %691 = vmatpush1.msra.mxu0 %v482
    %692 = vmatprep.subr.mxu0 0.0
    %693 = vmatpush1.msra.mxu0 0.0
    %694 = vmatprep.subr.mxu0 0.0
    %695 = vmatpush1.msra.mxu0 0.0
    %696 = vmatprep.subr.mxu0 0.0
    %697 = vmatpush1.msra.mxu0 0.0
    %698 = vmatprep.subr.mxu0 0.0
    %699 = vmatpush1.msra.mxu0 0.0
    %700 = vmatprep.subr.mxu0 0.0
    %701 = vmatpush1.msra.mxu0 0.0
    %702 = vmatprep.subr.mxu0 0.0
    %703 = vmatpush1.msra.mxu0 0.0
    %704 = vmatprep.subr.mxu0 0.0
    %705 = vmatpush1.msra.mxu0 0.0
    %706 = vmatprep.subr.mxu0 0.0
    %707 = vmatpush1.msra.mxu0 0.0
    %708 = vmatprep.subr.mxu0 0.0
    %709 = vmatpush1.msra.mxu0 0.0
    %710 = vmatprep.subr.mxu0 0.0
    %711 = vmatpush1.msra.mxu0 0.0
    %712 = vmatprep.subr.mxu0 0.0
    %713 = vmatpush1.msra.mxu0 0.0
    %714 = vmatprep.subr.mxu0 0.0
    %715 = vmatpush1.msra.mxu0 0.0
    %716 = vmatprep.subr.mxu0 0.0
    %717 = vmatpush1.msra.mxu0 0.0
    %718 = vmatprep.subr.mxu0 0.0
    %719 = vmatpush1.msra.mxu0 0.0
    %720 = vmatprep.subr.mxu0 0.0
    %721 = vmatpush1.msra.mxu0 0.0
    %722 = vmatprep.subr.mxu0 0.0
    %723 = vmatpush1.msra.mxu0 0.0
    %724 = vmatprep.mubr.f32.mxu0 0.0
    %725 = vmatmul.mubr.f32.gmra.mrb[0].mxu0 %v386
    %v726 = vpop.f32.mrb[0].mxu0
    %v727 = vadd.f32 %v648, %v726
    %v728 = vpop.f32.mrb[0].mxu0
    %v729 = vadd.f32 %v652, %v728
    %730 = vdwg.mxu0
    %731 = vmatprep.subr.mxu0 0.0
    %732 = vmatpush1.msra.mxu0 %v439
    %733 = vmatprep.subr.mxu0 0.0
    %734 = vmatpush1.msra.mxu0 %v442
    %735 = vmatprep.subr.mxu0 0.0
    %736 = vmatpush1.msra.mxu0 %v445
    %737 = vmatprep.subr.mxu0 0.0
    %738 = vmatpush1.msra.mxu0 %v448
    %739 = vmatprep.subr.mxu0 0.0
    %740 = vmatpush1.msra.mxu0 %v451
    %741 = vmatprep.subr.mxu0 0.0
    %742 = vmatpush1.msra.mxu0 %v454
    %743 = vmatprep.subr.mxu0 0.0
    %744 = vmatpush1.msra.mxu0 %v457
    %745 = vmatprep.subr.mxu0 0.0
    %746 = vmatpush1.msra.mxu0 %v460
    %747 = vmatprep.subr.mxu0 0.0
    %748 = vmatpush1.msra.mxu0 %v463
    %749 = vmatprep.subr.mxu0 0.0
    %750 = vmatpush1.msra.mxu0 %v466
    %751 = vmatprep.subr.mxu0 0.0
    %752 = vmatpush1.msra.mxu0 %v469
    %753 = vmatprep.subr.mxu0 0.0
    %754 = vmatpush1.msra.mxu0 %v472
    %755 = vmatprep.subr.mxu0 0.0
    %756 = vmatpush1.msra.mxu0 %v475
    %757 = vmatprep.subr.mxu0 0.0
    %758 = vmatpush1.msra.mxu0 %v478
    %759 = vmatprep.subr.mxu0 0.0
    %760 = vmatpush1.msra.mxu0 %v481
    %761 = vmatprep.subr.mxu0 0.0
    %762 = vmatpush1.msra.mxu0 %v484
    %763 = vmatprep.subr.mxu0 0.0
    %764 = vmatpush1.msra.mxu0 0.0
    %765 = vmatprep.subr.mxu0 0.0
    %766 = vmatpush1.msra.mxu0 0.0
    %767 = vmatprep.subr.mxu0 0.0
    %768 = vmatpush1.msra.mxu0 0.0
    %769 = vmatprep.subr.mxu0 0.0
    %770 = vmatpush1.msra.mxu0 0.0
    %771 = vmatprep.subr.mxu0 0.0
    %772 = vmatpush1.msra.mxu0 0.0
    %773 = vmatprep.subr.mxu0 0.0
    %774 = vmatpush1.msra.mxu0 0.0
    %775 = vmatprep.subr.mxu0 0.0
    %776 = vmatpush1.msra.mxu0 0.0
    %777 = vmatprep.subr.mxu0 0.0
    %778 = vmatpush1.msra.mxu0 0.0
    %779 = vmatprep.subr.mxu0 0.0
    %780 = vmatpush1.msra.mxu0 0.0
    %781 = vmatprep.subr.mxu0 0.0
    %782 = vmatpush1.msra.mxu0 0.0
    %783 = vmatprep.subr.mxu0 0.0
    %784 = vmatpush1.msra.mxu0 0.0
    %785 = vmatprep.subr.mxu0 0.0
    %786 = vmatpush1.msra.mxu0 0.0
    %787 = vmatprep.subr.mxu0 0.0
    %788 = vmatpush1.msra.mxu0 0.0
    %789 = vmatprep.subr.mxu0 0.0
    %790 = vmatpush1.msra.mxu0 0.0
    %791 = vmatprep.subr.mxu0 0.0
    %792 = vmatpush1.msra.mxu0 0.0
    %793 = vmatprep.subr.mxu0 0.0
    %794 = vmatpush1.msra.mxu0 0.0
    %795 = vmatprep.mubr.f32.mxu0 0.0
    %796 = vmatmul.mubr.f32.gmra.mrb[0].mxu0 %v386
    %v797 = vpop.f32.mrb[0].mxu0
    %v798 = vadd.f32 %v656, %v797
    %v799 = vpop.f32.mrb[0].mxu0
    %800 = vdwg.mxu0
    %v801 = vadd.f32 %v570, %v727
    %v802 = vsub.f32 0.0, %v801
    %v803 = vmul.f32 %v802, 1.442695
    %v804 = vpow.pop %v803
    %v805 = vadd.f32 %v804, 1.0
    %v806 = vrcp.pop %v805
    %v807 = vmul.f32 1.0, %v806
    %v808 = vadd.f32 %v572, %v729
    %v809 = vsub.f32 0.0, %v808
    %v810 = vmul.f32 %v809, 1.442695
    %v811 = vpow.pop %v810
    %v812 = vadd.f32 %v811, 1.0
    %v813 = vrcp.pop %v812
    %v814 = vmul.f32 1.0, %v813
    %v815 = vmul.f32 %v807, %v798
    %v816 = vadd.f32 %v641, %v815
    %v817 = vtanh.pop %v816
    %v818 = vsub.f32 1.0, %v814
    %v819 = vmul.f32 %v818, %v817
    %v820 = vmul.f32 %v814, %v386
    %v821 = vadd.f32 %v819, %v820
    %v822 = vld [vmem:[#allocation9] sm:$0xff]
    %v823 = vld [vmem:[#allocation9 + $0x8] sm:$0xff]
    %v824 = vld [vmem:[#allocation9 + $0x10] sm:$0xff]
    %v825 = vld [vmem:[#allocation9 + $0x18] sm:$0xff]
    %v826 = vld [vmem:[#allocation9 + $0x20] sm:$0xff]
    %v827 = vld [vmem:[#allocation9 + $0x28] sm:$0xff]
    %v828 = vld [vmem:[#allocation9 + $0x30] sm:$0xff]
    %v829 = vld [vmem:[#allocation9 + $0x38] sm:$0xff]
    %v830 = vld [vmem:[#allocation9 + $0x40] sm:$0xff]
    %v831 = vld [vmem:[#allocation9 + $0x48] sm:$0xff]
    %v832 = vld [vmem:[#allocation9 + $0x50] sm:$0xff]
    %v833 = vld [vmem:[#allocation9 + $0x58] sm:$0xff]
    %v834 = vld [vmem:[#allocation9 + $0x60] sm:$0xff]
    %v835 = vld [vmem:[#allocation9 + $0x68] sm:$0xff]
    %v836 = vld [vmem:[#allocation9 + $0x70] sm:$0xff]
    %v837 = vld [vmem:[#allocation9 + $0x78] sm:$0xff]
    %v838 = vld [vmem:[#allocation9 + $0x80] sm:$0xff]
    %v839 = vld [vmem:[#allocation9 + $0x88] sm:$0xff]
    %v840 = vld [vmem:[#allocation9 + $0x90] sm:$0xff]
    %v841 = vld [vmem:[#allocation9 + $0x98] sm:$0xff]
    %v842 = vld [vmem:[#allocation9 + $0xa0] sm:$0xff]
    %v843 = vld [vmem:[#allocation9 + $0xa8] sm:$0xff]
    %v844 = vld [vmem:[#allocation9 + $0xb0] sm:$0xff]
    %v845 = vld [vmem:[#allocation9 + $0xb8] sm:$0xff]
    %v846 = vld [vmem:[#allocation9 + $0xc0] sm:$0xff]
    %v847 = vld [vmem:[#allocation9 + $0xc8] sm:$0xff]
    %v848 = vld [vmem:[#allocation9 + $0xd0] sm:$0xff]
    %v849 = vld [vmem:[#allocation9 + $0xd8] sm:$0xff]
    %v850 = vld [vmem:[#allocation9 + $0xe0] sm:$0xff]
    %v851 = vld [vmem:[#allocation9 + $0xe8] sm:$0xff]
    %v852 = vld [vmem:[#allocation9 + $0xf0] sm:$0xff]
    %v853 = vld [vmem:[#allocation9 + $0xf8] sm:$0xff]
    %v854 = vld [vmem:[#allocation9 + $0x100] sm:$0xff]
    %v855 = vld [vmem:[#allocation9 + $0x108] sm:$0xff]
    %v856 = vld [vmem:[#allocation9 + $0x110] sm:$0xff]
    %v857 = vld [vmem:[#allocation9 + $0x118] sm:$0xff]
    %v858 = vld [vmem:[#allocation9 + $0x120] sm:$0xff]
    %v859 = vld [vmem:[#allocation9 + $0x128] sm:$0xff]
    %v860 = vld [vmem:[#allocation9 + $0x130] sm:$0xff]
    %v861 = vld [vmem:[#allocation9 + $0x138] sm:$0xff]
    %v862 = vld [vmem:[#allocation9 + $0x140] sm:$0xff]
    %v863 = vld [vmem:[#allocation9 + $0x148] sm:$0xff]
    %v864 = vld [vmem:[#allocation9 + $0x150] sm:$0xff]
    %v865 = vld [vmem:[#allocation9 + $0x158] sm:$0xff]
    %v866 = vld [vmem:[#allocation9 + $0x160] sm:$0xff]
    %v867 = vld [vmem:[#allocation9 + $0x168] sm:$0xff]
    %v868 = vld [vmem:[#allocation9 + $0x170] sm:$0xff]
    %v869 = vld [vmem:[#allocation9 + $0x178] sm:$0xff]
    %v870 = vld [vmem:[#allocation11] sm:$0xff]
    %v871 = vld [vmem:[#allocation11 + $0x8] sm:$0xff]
    %v872 = vld [vmem:[#allocation11 + $0x10] sm:$0xff]
    %v873 = vld [vmem:[#allocation11 + $0x18] sm:$0xff]
    %v874 = vld [vmem:[#allocation11 + $0x20] sm:$0xff]
    %v875 = vld [vmem:[#allocation11 + $0x28] sm:$0xff]
    %v876 = vld [vmem:[#allocation11 + $0x30] sm:$0xff]
    %v877 = vld [vmem:[#allocation11 + $0x38] sm:$0xff]
    %v878 = vld [vmem:[#allocation11 + $0x40] sm:$0xff]
    %v879 = vld [vmem:[#allocation11 + $0x48] sm:$0xff]
    %v880 = vld [vmem:[#allocation11 + $0x50] sm:$0xff]
    %v881 = vld [vmem:[#allocation11 + $0x58] sm:$0xff]
    %v882 = vld [vmem:[#allocation11 + $0x60] sm:$0xff]
    %v883 = vld [vmem:[#allocation11 + $0x68] sm:$0xff]
    %v884 = vld [vmem:[#allocation11 + $0x70] sm:$0xff]
    %v885 = vld [vmem:[#allocation11 + $0x78] sm:$0xff]
    %v886 = vld [vmem:[#allocation11 + $0x80] sm:$0xff]
    %v887 = vld [vmem:[#allocation11 + $0x88] sm:$0xff]
    %v888 = vld [vmem:[#allocation11 + $0x90] sm:$0xff]
    %v889 = vld [vmem:[#allocation11 + $0x98] sm:$0xff]
    %v890 = vld [vmem:[#allocation11 + $0xa0] sm:$0xff]
    %v891 = vld [vmem:[#allocation11 + $0xa8] sm:$0xff]
    %v892 = vld [vmem:[#allocation11 + $0xb0] sm:$0xff]
    %v893 = vld [vmem:[#allocation11 + $0xb8] sm:$0xff]
    %v894 = vld [vmem:[#allocation11 + $0xc0] sm:$0xff]
    %v895 = vld [vmem:[#allocation11 + $0xc8] sm:$0xff]
    %v896 = vld [vmem:[#allocation11 + $0xd0] sm:$0xff]
    %v897 = vld [vmem:[#allocation11 + $0xd8] sm:$0xff]
    %v898 = vld [vmem:[#allocation11 + $0xe0] sm:$0xff]
    %v899 = vld [vmem:[#allocation11 + $0xe8] sm:$0xff]
    %v900 = vld [vmem:[#allocation11 + $0xf0] sm:$0xff]
    %v901 = vld [vmem:[#allocation11 + $0xf8] sm:$0xff]
    %v902 = vld [vmem:[#allocation11 + $0x100] sm:$0xff]
    %v903 = vld [vmem:[#allocation11 + $0x108] sm:$0xff]
    %v904 = vld [vmem:[#allocation11 + $0x110] sm:$0xff]
    %v905 = vld [vmem:[#allocation11 + $0x118] sm:$0xff]
    %v906 = vld [vmem:[#allocation11 + $0x120] sm:$0xff]
    %v907 = vld [vmem:[#allocation11 + $0x128] sm:$0xff]
    %v908 = vld [vmem:[#allocation11 + $0x130] sm:$0xff]
    %v909 = vld [vmem:[#allocation11 + $0x138] sm:$0xff]
    %v910 = vld [vmem:[#allocation11 + $0x140] sm:$0xff]
    %v911 = vld [vmem:[#allocation11 + $0x148] sm:$0xff]
    %v912 = vld [vmem:[#allocation11 + $0x150] sm:$0xff]
    %v913 = vld [vmem:[#allocation11 + $0x158] sm:$0xff]
    %v914 = vld [vmem:[#allocation11 + $0x160] sm:$0xff]
    %v915 = vld [vmem:[#allocation11 + $0x168] sm:$0xff]
    %v916 = vld [vmem:[#allocation11 + $0x170] sm:$0xff]
    %v917 = vld [vmem:[#allocation11 + $0x178] sm:$0xff]
    %v918 = vld [vmem:[%s15] sm:$0x7]
    %v919 = vld [vmem:[%s16] sm:$0x7]
    %v921 = vlaneseq
    %v922 = vshrl.u32 %v921, 7
    %v923 = vsub.s32 0, %v922
    %v924 = vrot.slane %v918, %v923
    %v925 = vlaneseq
    %v926 = vshrl.u32 %v925, 7
    %v927 = vsub.s32 1, %v926
    %v928 = vrot.slane %v918, %v927
    %v929 = vlaneseq
    %v930 = vshrl.u32 %v929, 7
    %v931 = vsub.s32 2, %v930
    %v932 = vrot.slane %v918, %v931
    %936 = vmatprep.subr.mxu0 %v823
    %937 = vmatpush1.msra.mxu0 %v822
    %938 = vmatprep.subr.mxu0 %v826
    %939 = vmatpush1.msra.mxu0 %v825
    %940 = vmatprep.subr.mxu0 %v829
    %941 = vmatpush1.msra.mxu0 %v828
    %942 = vmatprep.subr.mxu0 %v832
    %943 = vmatpush1.msra.mxu0 %v831
    %944 = vmatprep.subr.mxu0 %v835
    %945 = vmatpush1.msra.mxu0 %v834
    %946 = vmatprep.subr.mxu0 %v838
    %947 = vmatpush1.msra.mxu0 %v837
    %948 = vmatprep.subr.mxu0 %v841
    %949 = vmatpush1.msra.mxu0 %v840
    %950 = vmatprep.subr.mxu0 %v844
    %951 = vmatpush1.msra.mxu0 %v843
    %952 = vmatprep.subr.mxu0 %v847
    %953 = vmatpush1.msra.mxu0 %v846
    %954 = vmatprep.subr.mxu0 %v850
    %955 = vmatpush1.msra.mxu0 %v849
    %956 = vmatprep.subr.mxu0 %v853
    %957 = vmatpush1.msra.mxu0 %v852
    %958 = vmatprep.subr.mxu0 %v856
    %959 = vmatpush1.msra.mxu0 %v855
    %960 = vmatprep.subr.mxu0 %v859
    %961 = vmatpush1.msra.mxu0 %v858
    %962 = vmatprep.subr.mxu0 %v862
    %963 = vmatpush1.msra.mxu0 %v861
    %964 = vmatprep.subr.mxu0 %v865
    %965 = vmatpush1.msra.mxu0 %v864
    %966 = vmatprep.subr.mxu0 %v868
    %967 = vmatpush1.msra.mxu0 %v867
    %968 = vmatprep.subr.mxu0 0.0
    %969 = vmatpush1.msra.mxu0 0.0
    %970 = vmatprep.subr.mxu0 0.0
    %971 = vmatpush1.msra.mxu0 0.0
    %972 = vmatprep.subr.mxu0 0.0
    %973 = vmatpush1.msra.mxu0 0.0
    %974 = vmatprep.subr.mxu0 0.0
    %975 = vmatpush1.msra.mxu0 0.0
    %976 = vmatprep.subr.mxu0 0.0
    %977 = vmatpush1.msra.mxu0 0.0
    %978 = vmatprep.subr.mxu0 0.0
    %979 = vmatpush1.msra.mxu0 0.0
    %980 = vmatprep.subr.mxu0 0.0
    %981 = vmatpush1.msra.mxu0 0.0
    %982 = vmatprep.subr.mxu0 0.0
    %983 = vmatpush1.msra.mxu0 0.0
    %984 = vmatprep.subr.mxu0 0.0
    %985 = vmatpush1.msra.mxu0 0.0
    %986 = vmatprep.subr.mxu0 0.0
    %987 = vmatpush1.msra.mxu0 0.0
    %988 = vmatprep.subr.mxu0 0.0
    %989 = vmatpush1.msra.mxu0 0.0
    %990 = vmatprep.subr.mxu0 0.0
    %991 = vmatpush1.msra.mxu0 0.0
    %992 = vmatprep.subr.mxu0 0.0
    %993 = vmatpush1.msra.mxu0 0.0
    %994 = vmatprep.subr.mxu0 0.0
    %995 = vmatpush1.msra.mxu0 0.0
    %996 = vmatprep.subr.mxu0 0.0
    %997 = vmatpush1.msra.mxu0 0.0
    %998 = vmatprep.subr.mxu0 0.0
    %999 = vmatpush1.msra.mxu0 0.0
    %1000 = vmatprep.mubr.f32.mxu0 0.0
    %1001 = vmatmul.mubr.f32.gmra.mrb[0].mxu0 %v821
    %v1002 = vpop.f32.mrb[0].mxu0
    %v1003 = vadd.f32 %v924, %v1002
    %v1004 = vpop.f32.mrb[0].mxu0
    %v1005 = vadd.f32 %v928, %v1004
    %1006 = vdwg.mxu0
    %1007 = vmatprep.subr.mxu0 0.0
    %1008 = vmatpush1.msra.mxu0 %v824
    %1009 = vmatprep.subr.mxu0 0.0
    %1010 = vmatpush1.msra.mxu0 %v827
    %1011 = vmatprep.subr.mxu0 0.0
    %1012 = vmatpush1.msra.mxu0 %v830
    %1013 = vmatprep.subr.mxu0 0.0
    %1014 = vmatpush1.msra.mxu0 %v833
    %1015 = vmatprep.subr.mxu0 0.0
    %1016 = vmatpush1.msra.mxu0 %v836
    %1017 = vmatprep.subr.mxu0 0.0
    %1018 = vmatpush1.msra.mxu0 %v839
    %1019 = vmatprep.subr.mxu0 0.0
    %1020 = vmatpush1.msra.mxu0 %v842
    %1021 = vmatprep.subr.mxu0 0.0
    %1022 = vmatpush1.msra.mxu0 %v845
    %1023 = vmatprep.subr.mxu0 0.0
    %1024 = vmatpush1.msra.mxu0 %v848
    %1025 = vmatprep.subr.mxu0 0.0
    %1026 = vmatpush1.msra.mxu0 %v851
    %1027 = vmatprep.subr.mxu0 0.0
    %1028 = vmatpush1.msra.mxu0 %v854
    %1029 = vmatprep.subr.mxu0 0.0
    %1030 = vmatpush1.msra.mxu0 %v857
    %1031 = vmatprep.subr.mxu0 0.0
    %1032 = vmatpush1.msra.mxu0 %v860
    %1033 = vmatprep.subr.mxu0 0.0
    %1034 = vmatpush1.msra.mxu0 %v863
    %1035 = vmatprep.subr.mxu0 0.0
    %1036 = vmatpush1.msra.mxu0 %v866
    %1037 = vmatprep.subr.mxu0 0.0
    %1038 = vmatpush1.msra.mxu0 %v869
    %1039 = vmatprep.subr.mxu0 0.0
    %1040 = vmatpush1.msra.mxu0 0.0
    %1041 = vmatprep.subr.mxu0 0.0
    %1042 = vmatpush1.msra.mxu0 0.0
    %1043 = vmatprep.subr.mxu0 0.0
    %1044 = vmatpush1.msra.mxu0 0.0
    %1045 = vmatprep.subr.mxu0 0.0
    %1046 = vmatpush1.msra.mxu0 0.0
    %1047 = vmatprep.subr.mxu0 0.0
    %1048 = vmatpush1.msra.mxu0 0.0
    %1049 = vmatprep.subr.mxu0 0.0
    %1050 = vmatpush1.msra.mxu0 0.0
    %1051 = vmatprep.subr.mxu0 0.0
    %1052 = vmatpush1.msra.mxu0 0.0
    %1053 = vmatprep.subr.mxu0 0.0
    %1054 = vmatpush1.msra.mxu0 0.0
    %1055 = vmatprep.subr.mxu0 0.0
    %1056 = vmatpush1.msra.mxu0 0.0
    %1057 = vmatprep.subr.mxu0 0.0
    %1058 = vmatpush1.msra.mxu0 0.0
    %1059 = vmatprep.subr.mxu0 0.0
    %1060 = vmatpush1.msra.mxu0 0.0
    %1061 = vmatprep.subr.mxu0 0.0
    %1062 = vmatpush1.msra.mxu0 0.0
    %1063 = vmatprep.subr.mxu0 0.0
    %1064 = vmatpush1.msra.mxu0 0.0
    %1065 = vmatprep.subr.mxu0 0.0
    %1066 = vmatpush1.msra.mxu0 0.0
    %1067 = vmatprep.subr.mxu0 0.0
    %1068 = vmatpush1.msra.mxu0 0.0
    %1069 = vmatprep.subr.mxu0 0.0
    %1070 = vmatpush1.msra.mxu0 0.0
    %1071 = vmatprep.mubr.f32.mxu0 0.0
    %1072 = vmatmul.mubr.f32.gmra.mrb[0].mxu0 %v821
    %v1073 = vpop.f32.mrb[0].mxu0
    %v1074 = vadd.f32 %v932, %v1073
    %v1075 = vpop.f32.mrb[0].mxu0
    %1076 = vdwg.mxu0
    %v1078 = vlaneseq
    %v1079 = vshrl.u32 %v1078, 7
    %v1080 = vsub.s32 0, %v1079
    %v1081 = vrot.slane %v919, %v1080
    %v1082 = vlaneseq
    %v1083 = vshrl.u32 %v1082, 7
    %v1084 = vsub.s32 1, %v1083
    %v1085 = vrot.slane %v919, %v1084
    %v1086 = vlaneseq
    %v1087 = vshrl.u32 %v1086, 7
    %v1088 = vsub.s32 2, %v1087
    %v1089 = vrot.slane %v919, %v1088
    %1093 = vmatprep.subr.mxu0 %v871
    %1094 = vmatpush1.msra.mxu0 %v870
    %1095 = vmatprep.subr.mxu0 %v874
    %1096 = vmatpush1.msra.mxu0 %v873
    %1097 = vmatprep.subr.mxu0 %v877
    %1098 = vmatpush1.msra.mxu0 %v876
    %1099 = vmatprep.subr.mxu0 %v880
    %1100 = vmatpush1.msra.mxu0 %v879
    %1101 = vmatprep.subr.mxu0 %v883
    %1102 = vmatpush1.msra.mxu0 %v882
    %1103 = vmatprep.subr.mxu0 %v886
    %1104 = vmatpush1.msra.mxu0 %v885
    %1105 = vmatprep.subr.mxu0 %v889
    %1106 = vmatpush1.msra.mxu0 %v888
    %1107 = vmatprep.subr.mxu0 %v892
    %1108 = vmatpush1.msra.mxu0 %v891
    %1109 = vmatprep.subr.mxu0 %v895
    %1110 = vmatpush1.msra.mxu0 %v894
    %1111 = vmatprep.subr.mxu0 %v898
    %1112 = vmatpush1.msra.mxu0 %v897
    %1113 = vmatprep.subr.mxu0 %v901
    %1114 = vmatpush1.msra.mxu0 %v900
    %1115 = vmatprep.subr.mxu0 %v904
    %1116 = vmatpush1.msra.mxu0 %v903
    %1117 = vmatprep.subr.mxu0 %v907
    %1118 = vmatpush1.msra.mxu0 %v906
    %1119 = vmatprep.subr.mxu0 %v910
    %1120 = vmatpush1.msra.mxu0 %v909
    %1121 = vmatprep.subr.mxu0 %v913
    %1122 = vmatpush1.msra.mxu0 %v912
    %1123 = vmatprep.subr.mxu0 %v916
    %1124 = vmatpush1.msra.mxu0 %v915
    %1125 = vmatprep.subr.mxu0 0.0
    %1126 = vmatpush1.msra.mxu0 0.0
    %1127 = vmatprep.subr.mxu0 0.0
    %1128 = vmatpush1.msra.mxu0 0.0
    %1129 = vmatprep.subr.mxu0 0.0
    %1130 = vmatpush1.msra.mxu0 0.0
    %1131 = vmatprep.subr.mxu0 0.0
    %1132 = vmatpush1.msra.mxu0 0.0
    %1133 = vmatprep.subr.mxu0 0.0
    %1134 = vmatpush1.msra.mxu0 0.0
    %1135 = vmatprep.subr.mxu0 0.0
    %1136 = vmatpush1.msra.mxu0 0.0
    %1137 = vmatprep.subr.mxu0 0.0
    %1138 = vmatpush1.msra.mxu0 0.0
    %1139 = vmatprep.subr.mxu0 0.0
    %1140 = vmatpush1.msra.mxu0 0.0
    %1141 = vmatprep.subr.mxu0 0.0
    %1142 = vmatpush1.msra.mxu0 0.0
    %1143 = vmatprep.subr.mxu0 0.0
    %1144 = vmatpush1.msra.mxu0 0.0
    %1145 = vmatprep.subr.mxu0 0.0
    %1146 = vmatpush1.msra.mxu0 0.0
    %1147 = vmatprep.subr.mxu0 0.0
    %1148 = vmatpush1.msra.mxu0 0.0
    %1149 = vmatprep.subr.mxu0 0.0
    %1150 = vmatpush1.msra.mxu0 0.0
    %1151 = vmatprep.subr.mxu0 0.0
    %1152 = vmatpush1.msra.mxu0 0.0
    %1153 = vmatprep.subr.mxu0 0.0
    %1154 = vmatpush1.msra.mxu0 0.0
    %1155 = vmatprep.subr.mxu0 0.0
    %1156 = vmatpush1.msra.mxu0 0.0
    %1157 = vmatprep.mubr.f32.mxu0 0.0
    %1158 = vmatmul.mubr.f32.gmra.mrb[0].mxu0 %v388
    %v1159 = vpop.f32.mrb[0].mxu0
    %v1160 = vadd.f32 %v1081, %v1159
    %v1161 = vpop.f32.mrb[0].mxu0
    %v1162 = vadd.f32 %v1085, %v1161
    %1163 = vdwg.mxu0
    %1164 = vmatprep.subr.mxu0 0.0
    %1165 = vmatpush1.msra.mxu0 %v872
    %1166 = vmatprep.subr.mxu0 0.0
    %1167 = vmatpush1.msra.mxu0 %v875
    %1168 = vmatprep.subr.mxu0 0.0
    %1169 = vmatpush1.msra.mxu0 %v878
    %1170 = vmatprep.subr.mxu0 0.0
    %1171 = vmatpush1.msra.mxu0 %v881
    %1172 = vmatprep.subr.mxu0 0.0
    %1173 = vmatpush1.msra.mxu0 %v884
    %1174 = vmatprep.subr.mxu0 0.0
    %1175 = vmatpush1.msra.mxu0 %v887
    %1176 = vmatprep.subr.mxu0 0.0
    %1177 = vmatpush1.msra.mxu0 %v890
    %1178 = vmatprep.subr.mxu0 0.0
    %1179 = vmatpush1.msra.mxu0 %v893
    %1180 = vmatprep.subr.mxu0 0.0
    %1181 = vmatpush1.msra.mxu0 %v896
    %1182 = vmatprep.subr.mxu0 0.0
    %1183 = vmatpush1.msra.mxu0 %v899
    %1184 = vmatprep.subr.mxu0 0.0
    %1185 = vmatpush1.msra.mxu0 %v902
    %1186 = vmatprep.subr.mxu0 0.0
    %1187 = vmatpush1.msra.mxu0 %v905
    %1188 = vmatprep.subr.mxu0 0.0
    %1189 = vmatpush1.msra.mxu0 %v908
    %1190 = vmatprep.subr.mxu0 0.0
    %1191 = vmatpush1.msra.mxu0 %v911
    %1192 = vmatprep.subr.mxu0 0.0
    %1193 = vmatpush1.msra.mxu0 %v914
    %1194 = vmatprep.subr.mxu0 0.0
    %1195 = vmatpush1.msra.mxu0 %v917
    %1196 = vmatprep.subr.mxu0 0.0
    %1197 = vmatpush1.msra.mxu0 0.0
    %1198 = vmatprep.subr.mxu0 0.0
    %1199 = vmatpush1.msra.mxu0 0.0
    %1200 = vmatprep.subr.mxu0 0.0
    %1201 = vmatpush1.msra.mxu0 0.0
    %1202 = vmatprep.subr.mxu0 0.0
    %1203 = vmatpush1.msra.mxu0 0.0
    %1204 = vmatprep.subr.mxu0 0.0
    %1205 = vmatpush1.msra.mxu0 0.0
    %1206 = vmatprep.subr.mxu0 0.0
    %1207 = vmatpush1.msra.mxu0 0.0
    %1208 = vmatprep.subr.mxu0 0.0
    %1209 = vmatpush1.msra.mxu0 0.0
    %1210 = vmatprep.subr.mxu0 0.0
    %1211 = vmatpush1.msra.mxu0 0.0
    %1212 = vmatprep.subr.mxu0 0.0
    %1213 = vmatpush1.msra.mxu0 0.0
    %1214 = vmatprep.subr.mxu0 0.0
    %1215 = vmatpush1.msra.mxu0 0.0
    %1216 = vmatprep.subr.mxu0 0.0
    %1217 = vmatpush1.msra.mxu0 0.0
    %1218 = vmatprep.subr.mxu0 0.0
    %1219 = vmatpush1.msra.mxu0 0.0
    %1220 = vmatprep.subr.mxu0 0.0
    %1221 = vmatpush1.msra.mxu0 0.0
    %1222 = vmatprep.subr.mxu0 0.0
    %1223 = vmatpush1.msra.mxu0 0.0
    %1224 = vmatprep.subr.mxu0 0.0
    %1225 = vmatpush1.msra.mxu0 0.0
    %1226 = vmatprep.subr.mxu0 0.0
    %1227 = vmatpush1.msra.mxu0 0.0
    %1228 = vmatprep.mubr.f32.mxu0 0.0
    %1229 = vmatmul.mubr.f32.gmra.mrb[0].mxu0 %v388
    %v1230 = vpop.f32.mrb[0].mxu0
    %v1231 = vadd.f32 %v1089, %v1230
    %v1232 = vpop.f32.mrb[0].mxu0
    %1233 = vdwg.mxu0
    %v1234 = vadd.f32 %v1003, %v1160
    %v1235 = vsub.f32 0.0, %v1234
    %v1236 = vmul.f32 %v1235, 1.442695
    %v1237 = vpow.pop %v1236
    %v1238 = vadd.f32 %v1237, 1.0
    %v1239 = vrcp.pop %v1238
    %v1240 = vmul.f32 1.0, %v1239
    %v1241 = vadd.f32 %v1005, %v1162
    %v1242 = vsub.f32 0.0, %v1241
    %v1243 = vmul.f32 %v1242, 1.442695
    %v1244 = vpow.pop %v1243
    %v1245 = vadd.f32 %v1244, 1.0
    %v1246 = vrcp.pop %v1245
    %v1247 = vmul.f32 1.0, %v1246
    %v1248 = vmul.f32 %v1240, %v1231
    %v1249 = vadd.f32 %v1074, %v1248
    %v1250 = vtanh.pop %v1249
    %v1251 = vsub.f32 1.0, %v1247
    %v1252 = vmul.f32 %v1251, %v1250
    %v1253 = vmul.f32 %v1247, %v388
    %v1254 = vadd.f32 %v1252, %v1253
    %1255 = vst [vmem:[#allocation13] sm:$0xff] %v821
    %s1256 = scalar_lea.vmem [#allocation13], 8
    %1257 = vst [vmem:[%s1256] sm:$0xff] %v1254
    %v1258 = vld [vmem:[%s18] sm:$0xff]
    %v1259 = vld [vmem:[%s18 + $0x8] sm:$0xff]
    %v1260 = vld [vmem:[%s18 + $0x10] sm:$0xff]
    %v1261 = vld [vmem:[%s18 + $0x18] sm:$0xff]
    %v1262 = vld [vmem:[%s18 + $0x20] sm:$0xff]
    %v1263 = vld [vmem:[%s18 + $0x28] sm:$0xff]
    %v1264 = vld [vmem:[%s18 + $0x30] sm:$0xff]
    %v1265 = vld [vmem:[%s18 + $0x38] sm:$0xff]
    %v1266 = vld [vmem:[%s18 + $0x40] sm:$0xff]
    %v1267 = vld [vmem:[%s18 + $0x48] sm:$0xff]
    %v1268 = vld [vmem:[%s18 + $0x50] sm:$0xff]
    %v1269 = vld [vmem:[%s18 + $0x58] sm:$0xff]
    %v1270 = vld [vmem:[%s18 + $0x60] sm:$0xff]
    %v1271 = vld [vmem:[%s18 + $0x68] sm:$0xff]
    %v1272 = vld [vmem:[%s18 + $0x70] sm:$0xff]
    %v1273 = vld [vmem:[%s18 + $0x78] sm:$0xff]
    %v1274 = vld [vmem:[%s18 + $0x80] sm:$0xff]
    %v1275 = vld [vmem:[%s18 + $0x88] sm:$0xff]
    %v1276 = vld [vmem:[%s18 + $0x90] sm:$0xff]
    %v1277 = vld [vmem:[%s18 + $0x98] sm:$0xff]
    %v1278 = vld [vmem:[%s18 + $0xa0] sm:$0xff]
    %v1279 = vld [vmem:[%s18 + $0xa8] sm:$0xff]
    %v1280 = vld [vmem:[%s18 + $0xb0] sm:$0xff]
    %v1281 = vld [vmem:[%s18 + $0xb8] sm:$0xff]
    %v1282 = vld [vmem:[%s18 + $0xc0] sm:$0xff]
    %v1283 = vld [vmem:[%s18 + $0xc8] sm:$0xff]
    %v1284 = vld [vmem:[%s18 + $0xd0] sm:$0xff]
    %v1285 = vld [vmem:[%s18 + $0xd8] sm:$0xff]
    %v1286 = vld [vmem:[%s18 + $0xe0] sm:$0xff]
    %v1287 = vld [vmem:[%s18 + $0xe8] sm:$0xff]
    %v1288 = vld [vmem:[%s18 + $0xf0] sm:$0xff]
    %v1289 = vld [vmem:[%s18 + $0xf8] sm:$0xff]
    %v1290 = vld [vmem:[%s19] sm:$0x3]
    %v1292 = vlaneseq
    %v1293 = vshrl.u32 %v1292, 7
    %v1294 = vsub.s32 0, %v1293
    %v1295 = vrot.slane %v1290, %v1294
    %v1296 = vlaneseq
    %v1297 = vshrl.u32 %v1296, 7
    %v1298 = vsub.s32 1, %v1297
    %v1299 = vrot.slane %v1290, %v1298
    %1302 = vmatprep.subr.mxu0 %v1259
    %1303 = vmatpush1.msra.mxu0 %v1258
    %1304 = vmatprep.subr.mxu0 %v1261
    %1305 = vmatpush1.msra.mxu0 %v1260
    %1306 = vmatprep.subr.mxu0 %v1263
    %1307 = vmatpush1.msra.mxu0 %v1262
    %1308 = vmatprep.subr.mxu0 %v1265
    %1309 = vmatpush1.msra.mxu0 %v1264
    %1310 = vmatprep.subr.mxu0 %v1267
    %1311 = vmatpush1.msra.mxu0 %v1266
    %1312 = vmatprep.subr.mxu0 %v1269
    %1313 = vmatpush1.msra.mxu0 %v1268
    %1314 = vmatprep.subr.mxu0 %v1271
    %1315 = vmatpush1.msra.mxu0 %v1270
    %1316 = vmatprep.subr.mxu0 %v1273
    %1317 = vmatpush1.msra.mxu0 %v1272
    %1318 = vmatprep.subr.mxu0 %v1275
    %1319 = vmatpush1.msra.mxu0 %v1274
    %1320 = vmatprep.subr.mxu0 %v1277
    %1321 = vmatpush1.msra.mxu0 %v1276
    %1322 = vmatprep.subr.mxu0 %v1279
    %1323 = vmatpush1.msra.mxu0 %v1278
    %1324 = vmatprep.subr.mxu0 %v1281
    %1325 = vmatpush1.msra.mxu0 %v1280
    %1326 = vmatprep.subr.mxu0 %v1283
    %1327 = vmatpush1.msra.mxu0 %v1282
    %1328 = vmatprep.subr.mxu0 %v1285
    %1329 = vmatpush1.msra.mxu0 %v1284
    %1330 = vmatprep.subr.mxu0 %v1287
    %1331 = vmatpush1.msra.mxu0 %v1286
    %1332 = vmatprep.subr.mxu0 %v1289
    %1333 = vmatpush1.msra.mxu0 %v1288
    %1334 = vmatprep.subr.mxu0 0.0
    %1335 = vmatpush1.msra.mxu0 0.0
    %1336 = vmatprep.subr.mxu0 0.0
    %1337 = vmatpush1.msra.mxu0 0.0
    %1338 = vmatprep.subr.mxu0 0.0
    %1339 = vmatpush1.msra.mxu0 0.0
    %1340 = vmatprep.subr.mxu0 0.0
    %1341 = vmatpush1.msra.mxu0 0.0
    %1342 = vmatprep.subr.mxu0 0.0
    %1343 = vmatpush1.msra.mxu0 0.0
    %1344 = vmatprep.subr.mxu0 0.0
    %1345 = vmatpush1.msra.mxu0 0.0
    %1346 = vmatprep.subr.mxu0 0.0
    %1347 = vmatpush1.msra.mxu0 0.0
    %1348 = vmatprep.subr.mxu0 0.0
    %1349 = vmatpush1.msra.mxu0 0.0
    %1350 = vmatprep.subr.mxu0 0.0
    %1351 = vmatpush1.msra.mxu0 0.0
    %1352 = vmatprep.subr.mxu0 0.0
    %1353 = vmatpush1.msra.mxu0 0.0
    %1354 = vmatprep.subr.mxu0 0.0
    %1355 = vmatpush1.msra.mxu0 0.0
    %1356 = vmatprep.subr.mxu0 0.0
    %1357 = vmatpush1.msra.mxu0 0.0
    %1358 = vmatprep.subr.mxu0 0.0
    %1359 = vmatpush1.msra.mxu0 0.0
    %1360 = vmatprep.subr.mxu0 0.0
    %1361 = vmatpush1.msra.mxu0 0.0
    %1362 = vmatprep.subr.mxu0 0.0
    %1363 = vmatpush1.msra.mxu0 0.0
    %1364 = vmatprep.subr.mxu0 0.0
    %1365 = vmatpush1.msra.mxu0 0.0
    %1366 = vmatprep.mubr.f32.mxu0 0.0
    %1367 = vmatmul.mubr.f32.gmra.mrb[0].mxu0 %v1254
    %v1368 = vpop.f32.mrb[0].mxu0
    %v1369 = vadd.f32 %v1295, %v1368
    %v1370 = vpop.f32.mrb[0].mxu0
    %v1371 = vadd.f32 %v1299, %v1370
    %1372 = vdwg.mxu0
    %v1373 = vmax.f32 %v1369, 0.0
    %v1374 = vmax.f32 %v1371, 0.0
    %v1375 = vld [vmem:[%s20] sm:$0xff]
    %v1376 = vld [vmem:[%s20 + $0x8] sm:$0xff]
    %v1377 = vld [vmem:[%s20 + $0x10] sm:$0xff]
    %v1378 = vld [vmem:[%s20 + $0x18] sm:$0xff]
    %v1379 = vld [vmem:[%s20 + $0x20] sm:$0xff]
    %v1380 = vld [vmem:[%s20 + $0x28] sm:$0xff]
    %v1381 = vld [vmem:[%s20 + $0x30] sm:$0xff]
    %v1382 = vld [vmem:[%s20 + $0x38] sm:$0xff]
    %v1383 = vld [vmem:[%s20 + $0x40] sm:$0xff]
    %v1384 = vld [vmem:[%s20 + $0x48] sm:$0xff]
    %v1385 = vld [vmem:[%s20 + $0x50] sm:$0xff]
    %v1386 = vld [vmem:[%s20 + $0x58] sm:$0xff]
    %v1387 = vld [vmem:[%s20 + $0x60] sm:$0xff]
    %v1388 = vld [vmem:[%s20 + $0x68] sm:$0xff]
    %v1389 = vld [vmem:[%s20 + $0x70] sm:$0xff]
    %v1390 = vld [vmem:[%s20 + $0x78] sm:$0xff]
    %v1391 = vld [vmem:[%s21] sm:$0x1]
    %v1393 = vlaneseq
    %v1394 = vshrl.u32 %v1393, 7
    %v1395 = vsub.s32 0, %v1394
    %v1396 = vrot.slane %v1391, %v1395
    %1398 = vmatprep.subr.mxu0 0.0
    %1399 = vmatpush1.msra.mxu0 %v1375
    %1400 = vmatprep.subr.mxu0 0.0
    %1401 = vmatpush1.msra.mxu0 %v1376
    %1402 = vmatprep.subr.mxu0 0.0
    %1403 = vmatpush1.msra.mxu0 %v1377
    %1404 = vmatprep.subr.mxu0 0.0
    %1405 = vmatpush1.msra.mxu0 %v1378
    %1406 = vmatprep.subr.mxu0 0.0
    %1407 = vmatpush1.msra.mxu0 %v1379
    %1408 = vmatprep.subr.mxu0 0.0
    %1409 = vmatpush1.msra.mxu0 %v1380
    %1410 = vmatprep.subr.mxu0 0.0
    %1411 = vmatpush1.msra.mxu0 %v1381
    %1412 = vmatprep.subr.mxu0 0.0
    %1413 = vmatpush1.msra.mxu0 %v1382
    %1414 = vmatprep.subr.mxu0 0.0
    %1415 = vmatpush1.msra.mxu0 %v1383
    %1416 = vmatprep.subr.mxu0 0.0
    %1417 = vmatpush1.msra.mxu0 %v1384
    %1418 = vmatprep.subr.mxu0 0.0
    %1419 = vmatpush1.msra.mxu0 %v1385
    %1420 = vmatprep.subr.mxu0 0.0
    %1421 = vmatpush1.msra.mxu0 %v1386
    %1422 = vmatprep.subr.mxu0 0.0
    %1423 = vmatpush1.msra.mxu0 %v1387
    %1424 = vmatprep.subr.mxu0 0.0
    %1425 = vmatpush1.msra.mxu0 %v1388
    %1426 = vmatprep.subr.mxu0 0.0
    %1427 = vmatpush1.msra.mxu0 %v1389
    %1428 = vmatprep.subr.mxu0 0.0
    %1429 = vmatpush1.msra.mxu0 %v1390
    %1430 = vmatprep.subr.mxu0 0.0
    %1431 = vmatpush1.msra.mxu0 0.0
    %1432 = vmatprep.subr.mxu0 0.0
    %1433 = vmatpush1.msra.mxu0 0.0
    %1434 = vmatprep.subr.mxu0 0.0
    %1435 = vmatpush1.msra.mxu0 0.0
    %1436 = vmatprep.subr.mxu0 0.0
    %1437 = vmatpush1.msra.mxu0 0.0
    %1438 = vmatprep.subr.mxu0 0.0
    %1439 = vmatpush1.msra.mxu0 0.0
    %1440 = vmatprep.subr.mxu0 0.0
    %1441 = vmatpush1.msra.mxu0 0.0
    %1442 = vmatprep.subr.mxu0 0.0
    %1443 = vmatpush1.msra.mxu0 0.0
    %1444 = vmatprep.subr.mxu0 0.0
    %1445 = vmatpush1.msra.mxu0 0.0
    %1446 = vmatprep.subr.mxu0 0.0
    %1447 = vmatpush1.msra.mxu0 0.0
    %1448 = vmatprep.subr.mxu0 0.0
    %1449 = vmatpush1.msra.mxu0 0.0
    %1450 = vmatprep.subr.mxu0 0.0
    %1451 = vmatpush1.msra.mxu0 0.0
    %1452 = vmatprep.subr.mxu0 0.0
    %1453 = vmatpush1.msra.mxu0 0.0
    %1454 = vmatprep.subr.mxu0 0.0
    %1455 = vmatpush1.msra.mxu0 0.0
    %1456 = vmatprep.subr.mxu0 0.0
    %1457 = vmatpush1.msra.mxu0 0.0
    %1458 = vmatprep.subr.mxu0 0.0
    %1459 = vmatpush1.msra.mxu0 0.0
    %1460 = vmatprep.subr.mxu0 0.0
    %1461 = vmatpush1.msra.mxu0 0.0
    %1462 = vmatprep.mubr.f32.mxu0 0.0
    %1463 = vmatmul.mubr.f32.gmra.mrb[0].mxu0 %v1373
    %v1464 = vpop.f32.mrb[0].mxu0
    %v1465 = vadd.f32 %v1396, %v1464
    %v1466 = vpop.f32.mrb[0].mxu0
    %1467 = vdwg.mxu0
    %vm1468 = vcmask 64512
    %v1469 = vsel %vm1468, %v1465, -inf
    %1470 = vmax.xlane.f32.xlu0 %v1469
    %v1471 = vpop.xlane.xlu0 %1470
    %v1472 = vsub.f32 %v1465, %v1471
    %v1473 = vmul.f32 %v1472, 1.442695
    %v1474 = vpow.pop %v1473
    %v1475 = vsel %vm1468, %v1474, 0.0
    %1476 = vadd.xlane.f32.xlu0 %v1475
    %v1477 = vpop.xlane.xlu0 %1476
    %v1478 = vrcp.pop %v1477
    %v1479 = vmul.f32 %v1474, %v1478
    %1480 = vst.msk [vmem:[#allocation12] sm:$0xff] %vm1468, %v1479
    %v1481 = vld [vmem:[%s22] sm:$0xff]
    %v1482 = vld [vmem:[%s22 + $0x8] sm:$0xff]
    %v1483 = vld [vmem:[%s22 + $0x10] sm:$0xff]
    %v1484 = vld [vmem:[%s22 + $0x18] sm:$0xff]
    %v1485 = vld [vmem:[%s22 + $0x20] sm:$0xff]
    %v1486 = vld [vmem:[%s22 + $0x28] sm:$0xff]
    %v1487 = vld [vmem:[%s22 + $0x30] sm:$0xff]
    %v1488 = vld [vmem:[%s22 + $0x38] sm:$0xff]
    %v1489 = vld [vmem:[%s22 + $0x40] sm:$0xff]
    %v1490 = vld [vmem:[%s22 + $0x48] sm:$0xff]
    %v1491 = vld [vmem:[%s22 + $0x50] sm:$0xff]
    %v1492 = vld [vmem:[%s22 + $0x58] sm:$0xff]
    %v1493 = vld [vmem:[%s22 + $0x60] sm:$0xff]
    %v1494 = vld [vmem:[%s22 + $0x68] sm:$0xff]
    %v1495 = vld [vmem:[%s22 + $0x70] sm:$0xff]
    %v1496 = vld [vmem:[%s22 + $0x78] sm:$0xff]
    %v1497 = vld [vmem:[#allocation2] sm:$0x1]
    %v1499 = vlaneseq
    %v1500 = vshrl.u32 %v1499, 7
    %v1501 = vsub.s32 0, %v1500
    %v1502 = vrot.slane %v1497, %v1501
    %1504 = vmatprep.subr.mxu0 0.0
    %1505 = vmatpush1.msra.mxu0 %v1481
    %1506 = vmatprep.subr.mxu0 0.0
    %1507 = vmatpush1.msra.mxu0 %v1482
    %1508 = vmatprep.subr.mxu0 0.0
    %1509 = vmatpush1.msra.mxu0 %v1483
    %1510 = vmatprep.subr.mxu0 0.0
    %1511 = vmatpush1.msra.mxu0 %v1484
    %1512 = vmatprep.subr.mxu0 0.0
    %1513 = vmatpush1.msra.mxu0 %v1485
    %1514 = vmatprep.subr.mxu0 0.0
    %1515 = vmatpush1.msra.mxu0 %v1486
    %1516 = vmatprep.subr.mxu0 0.0
    %1517 = vmatpush1.msra.mxu0 %v1487
    %1518 = vmatprep.subr.mxu0 0.0
    %1519 = vmatpush1.msra.mxu0 %v1488
    %1520 = vmatprep.subr.mxu0 0.0
    %1521 = vmatpush1.msra.mxu0 %v1489
    %1522 = vmatprep.subr.mxu0 0.0
    %1523 = vmatpush1.msra.mxu0 %v1490
    %1524 = vmatprep.subr.mxu0 0.0
    %1525 = vmatpush1.msra.mxu0 %v1491
    %1526 = vmatprep.subr.mxu0 0.0
    %1527 = vmatpush1.msra.mxu0 %v1492
    %1528 = vmatprep.subr.mxu0 0.0
    %1529 = vmatpush1.msra.mxu0 %v1493
    %1530 = vmatprep.subr.mxu0 0.0
    %1531 = vmatpush1.msra.mxu0 %v1494
    %1532 = vmatprep.subr.mxu0 0.0
    %1533 = vmatpush1.msra.mxu0 %v1495
    %1534 = vmatprep.subr.mxu0 0.0
    %1535 = vmatpush1.msra.mxu0 %v1496
    %1536 = vmatprep.subr.mxu0 0.0
    %1537 = vmatpush1.msra.mxu0 0.0
    %1538 = vmatprep.subr.mxu0 0.0
    %1539 = vmatpush1.msra.mxu0 0.0
    %1540 = vmatprep.subr.mxu0 0.0
    %1541 = vmatpush1.msra.mxu0 0.0
    %1542 = vmatprep.subr.mxu0 0.0
    %1543 = vmatpush1.msra.mxu0 0.0
    %1544 = vmatprep.subr.mxu0 0.0
    %1545 = vmatpush1.msra.mxu0 0.0
    %1546 = vmatprep.subr.mxu0 0.0
    %1547 = vmatpush1.msra.mxu0 0.0
    %1548 = vmatprep.subr.mxu0 0.0
    %1549 = vmatpush1.msra.mxu0 0.0
    %1550 = vmatprep.subr.mxu0 0.0
    %1551 = vmatpush1.msra.mxu0 0.0
    %1552 = vmatprep.subr.mxu0 0.0
    %1553 = vmatpush1.msra.mxu0 0.0
    %1554 = vmatprep.subr.mxu0 0.0
    %1555 = vmatpush1.msra.mxu0 0.0
    %1556 = vmatprep.subr.mxu0 0.0
    %1557 = vmatpush1.msra.mxu0 0.0
    %1558 = vmatprep.subr.mxu0 0.0
    %1559 = vmatpush1.msra.mxu0 0.0
    %1560 = vmatprep.subr.mxu0 0.0
    %1561 = vmatpush1.msra.mxu0 0.0
    %1562 = vmatprep.subr.mxu0 0.0
    %1563 = vmatpush1.msra.mxu0 0.0
    %1564 = vmatprep.subr.mxu0 0.0
    %1565 = vmatpush1.msra.mxu0 0.0
    %1566 = vmatprep.subr.mxu0 0.0
    %1567 = vmatpush1.msra.mxu0 0.0
    %1568 = vmatprep.mubr.f32.mxu0 0.0
    %1569 = vmatmul.mubr.f32.gmra.mrb[0].mxu0 %v1374
    %v1570 = vpop.f32.mrb[0].mxu0
    %v1571 = vadd.f32 %v1502, %v1570
    %v1572 = vpop.f32.mrb[0].mxu0
    %1573 = vdwg.mxu0
    %vm1574 = vcmask 7168
    %1575 = vst.msk [vmem:[%s25] sm:$0xff] %vm1574, %v1571
    // Predicated region
    $region118: #{tpu_custom_call.1} parent=1 // pred_check
      _
    $region119: #{tpu_custom_call.1} parent=1 // pred_check_branch
      %1577 = sbr.rel (0) target = $region121
    $region120: #{tpu_custom_call.1} parent=1 // pred_region
      %s1579 = ssub.s32 128, 128
      %1580 = vsyncadd [#allocation5], %s1579
      %s1582 = sshll.u32 [#allocation12], 4
      %s1583 = int_to_ptr.vmem [resolvable:$true] %s1582
      %1585 = dma.vmem_to_hbm [thread:$0]  %s1583, 128, %s24, [#allocation5]
    $region121: #{tpu_custom_call.1} parent=1 // pred_fallthru
      _
    // Predicated region
    $region122: #{tpu_custom_call.1} parent=1 // pred_check
      _
    $region123: #{tpu_custom_call.1} parent=1 // pred_check_branch
      %1587 = sbr.rel (0) target = $region125
    $region124: #{tpu_custom_call.1} parent=1 // pred_region
      _
    $region125: #{tpu_custom_call.1} parent=1 // pred_fallthru
      _
    // Predicated region
    $region126: #{tpu_custom_call.1} parent=1 // pred_check
      _
    $region127: #{tpu_custom_call.1} parent=1 // pred_check_branch
      %1589 = sbr.rel (0) target = $region129
    $region128: #{tpu_custom_call.1} parent=1 // pred_region
      %s1591 = ssub.s32 256, 256
      %1592 = vsyncadd [#allocation14], %s1591
      %s1593 = sshll.u32 [#allocation13], 4
      %s1594 = int_to_ptr.vmem [resolvable:$true] %s1593
      %1599 = dma.vmem_to_hbm [thread:$0]  %s1594, 256, %s26, [#allocation14], 128, 128, 8
    $region129: #{tpu_custom_call.1} parent=1 // pred_fallthru
      _
    // Predicated region
    $region130: #{tpu_custom_call.1} parent=1 // pred_check
      _
    $region131: #{tpu_custom_call.1} parent=1 // pred_check_branch
      %1601 = sbr.rel (0) target = $region133
    $region132: #{tpu_custom_call.1} parent=1 // pred_region
      %1602 = dma.done [#allocation5], 128
    $region133: #{tpu_custom_call.1} parent=1 // pred_fallthru
      _
    // Predicated region
    $region134: #{tpu_custom_call.1} parent=1 // pred_check
      _
    $region135: #{tpu_custom_call.1} parent=1 // pred_check_branch
      %1604 = sbr.rel (0) target = $region137
    $region136: #{tpu_custom_call.1} parent=1 // pred_region
      _
    $region137: #{tpu_custom_call.1} parent=1 // pred_fallthru
      _
    // Predicated region
    $region138: #{tpu_custom_call.1} parent=1 // pred_check
      _
    $region139: #{tpu_custom_call.1} parent=1 // pred_check_branch
      %1606 = sbr.rel (0) target = $region141
    $region140: #{tpu_custom_call.1} parent=1 // pred_region
      %1607 = dma.done [#allocation14], 256
    $region141: #{tpu_custom_call.1} parent=1 // pred_fallthru
      _
    %1608 = vsyncpa [#allocation4], 1
    %1609 = vsyncpa [#allocation7], 1
    %1610 = vsyncpa [#allocation10], 1
    %1611 = vsyncpa [#allocation5], 1
    %1612 = vsyncpa [#allocation14], 1

</llo_original>
